<compile_context>
chip_gen: v5e
topology: v5e:2x2
jax: 0.10.0
libtpu: 0.0.40
codegen_flags: <defaults>
</compile_context>

<pallas_src>
import functools
import numpy as np
import jax
import jax.numpy as jnp
from jax.experimental import pallas as pl
from jax.experimental.pallas import tpu as pltpu

FILT_SIZE = 4
STRIDE = 2
PAD_SIZE = (FILT_SIZE - 1) // 2                 # 1
EDGE_PAD = FILT_SIZE - 1 - (1 + PAD_SIZE)       # 1 (pad of the equivalent forward corr)


def _axis_upsample_matrix(n: int) -> np.ndarray:
    """(2n, n) matrix U such that U @ x is the 1-D anti-aliased 2x upsample of x.

    Encodes, per axis: replication pad by 1, zero-dilation by stride 2, correlation
    with the symmetric [1,3,3,1]/4 taps, and the +1 tap offset that folds the
    module's trailing crop.  Polyphase form:
        out[2r]   = (1*xp[r]   + 3*xp[r+1]) / 4
        out[2r+1] = (3*xp[r+1] + 1*xp[r+2]) / 4,   xp[i] = x[clamp(i-1, 0, n-1)]
    """
    r0 = np.zeros((2 * n, n + 2), np.float32)        # acts on the padded vector xp
    for r in range(n):
        r0[2 * r,     r]     += 1.0 / 4.0
        r0[2 * r,     r + 1] += 3.0 / 4.0
        r0[2 * r + 1, r + 1] += 3.0 / 4.0
        r0[2 * r + 1, r + 2] += 1.0 / 4.0
    u = np.zeros((2 * n, n), np.float32)             # fold replication pad into the matrix
    for i in range(n + 2):
        u[:, min(max(i - 1, 0), n - 1)] += r0[:, i]
    return u


def _pick_channel_block(nc, h, w, budget_bytes=8 * 1024 * 1024, bc_max=16):
    """Largest divisor of nc under a VMEM budget, preferring >= 2 grid steps."""
    bytes_per_channel = 2 * (h * w + 4 * h * w) * 4   # double-buffered in+out f32 blocks
    cap = max(1, min(bc_max, budget_bytes // max(bytes_per_channel, 1)))
    divisors = [d for d in range(1, nc + 1) if nc % d == 0 and d <= cap]
    two_plus = [d for d in divisors if nc // d >= 2]  # keep both v7x TensorCores busy
    return max(two_plus) if two_plus else max(divisors)


def _upsample_kernel(x_ref, rm_ref, ct_ref, o_ref, *, bc):
    # x_ref : (BC, H,  W )  VMEM  input channel images
    # rm_ref: (2H, H)       VMEM  row upsample matrix   (constant across grid)
    # ct_ref: (W,  2W)      VMEM  column upsample matrix, transposed (constant)
    # o_ref : (BC, 2H, 2W)  VMEM  output channel images
    rm = rm_ref[...]
    ct = ct_ref[...]
    for b in range(bc):                               # static, unrolled (bc <= 16)
        t = jnp.dot(rm, x_ref[b], preferred_element_type=jnp.float32,
                    precision=jax.lax.Precision.HIGHEST)          # (2H, W)
        o_ref[b] = jnp.dot(t, ct, preferred_element_type=jnp.float32,
                           precision=jax.lax.Precision.HIGHEST).astype(o_ref.dtype)


def basic_upsample(x):
    """x: (N, C, H, W) float32 -> (N, C, 2H, 2W); matches BasicUpsample.forward."""
    n, c, h, w = x.shape
    nc = n * c
    ho, wo = STRIDE * h, STRIDE * w

    xf = x.reshape(nc, h, w)
    rm = jnp.asarray(_axis_upsample_matrix(h))        # (2H, H)
    ct = jnp.asarray(_axis_upsample_matrix(w).T)      # (W, 2W)
    bc = _pick_channel_block(nc, h, w)

    out = pl.pallas_call(
        functools.partial(_upsample_kernel, bc=bc),
        out_shape=jax.ShapeDtypeStruct((nc, ho, wo), x.dtype),
        grid=(nc // bc,),
        in_specs=[
            pl.BlockSpec((bc, h, w), lambda i: (i, 0, 0)),
            pl.BlockSpec((ho, h), lambda i: (0, 0)),   # fetched once, stays resident
            pl.BlockSpec((w, wo), lambda i: (0, 0)),   # fetched once, stays resident
        ],
        out_specs=pl.BlockSpec((bc, ho, wo), lambda i: (i, 0, 0)),
        compiler_params=pltpu.CompilerParams(
            dimension_semantics=("parallel",),
            vmem_limit_bytes=32 * 1024 * 1024),
    )(xf, rm, ct)
    return out.reshape(n, c, ho, wo)


# ---------------------------- pure-JAX reference ----------------------------
def _make_filter():
    a = np.array([1.0, 3.0, 3.0, 1.0], np.float32)
    f2 = np.outer(a, a)
    f2 = f2 / f2.sum() * (STRIDE ** 2)
    return jnp.asarray(f2, jnp.float32)               # (4, 4)


def reference(x):
    """Reference of the PyTorch forward (depthwise conv_transpose2d + crops)."""
    n, c, h, w = x.shape
    xp = jnp.pad(x, ((0, 0), (0, 0), (1, 1), (1, 1)), mode='edge')
    wgt = jnp.broadcast_to(_make_filter(), (c, 1, FILT_SIZE, FILT_SIZE))
    out = jax.lax.conv_general_dilated(
        xp, wgt,
        window_strides=(1, 1),
        padding=((EDGE_PAD, EDGE_PAD), (EDGE_PAD, EDGE_PAD)),
        lhs_dilation=(STRIDE, STRIDE),
        dimension_numbers=('NCHW', 'OIHW', 'NCHW'),
        feature_group_count=c,
        precision=jax.lax.Precision.HIGHEST)
    return out[:, :, 1:-1, 1:-1]


if __name__ == "__main__":
    key = jax.random.PRNGKey(0)

    # primary shape from the module's typical use
    x = jax.random.normal(key, (2, 4, 16, 16), jnp.float32)
    out = basic_upsample(x)
    jax.block_until_ready(out)
    ref = reference(x)
    assert out.shape == (2, 4, 32, 32), out.shape
    assert jnp.allclose(out, ref, atol=1e-5, rtol=1e-5), float(jnp.abs(out - ref).max())

    # non-square / odd-channel-count sanity check
    x2 = jax.random.normal(jax.random.PRNGKey(1), (1, 3, 8, 24), jnp.float32)
    out2 = basic_upsample(x2)
    jax.block_until_ready(out2)
    ref2 = reference(x2)
    assert out2.shape == (1, 3, 16, 48), out2.shape
    assert jnp.allclose(out2, ref2, atol=1e-5, rtol=1e-5), float(jnp.abs(out2 - ref2).max())

    print("KERNEL_OK")
</pallas_src>

<mosaic_0001>
module attributes {stable_mosaic.version = 11 : i64} {
  func.func @_upsample_kernel(%arg0: i32, %arg1: memref<4x16x16xf32, #tpu.memory_space<vmem>>, %arg2: memref<32x16xf32, #tpu.memory_space<vmem>>, %arg3: memref<16x32xf32, #tpu.memory_space<vmem>>, %arg4: memref<4x32x32xf32, #tpu.memory_space<vmem>>) attributes {dimension_semantics = [#tpu.dimension_semantics<parallel>], iteration_bounds = array<i64: 2>, scalar_prefetch = 0 : i64, scratch_operands = 0 : i64, tpu.core_type = #tpu.core_type<tc>, window_params = [{transform_indices = @transform_0, window_bounds = array<i64: 4, 16, 16>}, {pipeline_mode = #tpu.pipeline_mode<synchronous>, transform_indices = @transform_1, window_bounds = array<i64: 32, 16>}, {pipeline_mode = #tpu.pipeline_mode<synchronous>, transform_indices = @transform_2, window_bounds = array<i64: 16, 32>}, {transform_indices = @transform_3, window_bounds = array<i64: 4, 32, 32>}]} {
    %c0 = arith.constant 0 : index
    %c0_0 = arith.constant 0 : index
    %0 = vector.load %arg2[%c0, %c0_0] : memref<32x16xf32, #tpu.memory_space<vmem>>, vector<32x16xf32>
    %c0_1 = arith.constant 0 : index
    %c0_2 = arith.constant 0 : index
    %1 = vector.load %arg3[%c0_1, %c0_2] : memref<16x32xf32, #tpu.memory_space<vmem>>, vector<16x32xf32>
    %c0_3 = arith.constant 0 : index
    %c0_4 = arith.constant 0 : index
    %c0_5 = arith.constant 0 : index
    %2 = vector.load %arg1[%c0_3, %c0_4, %c0_5] : memref<4x16x16xf32, #tpu.memory_space<vmem>>, vector<1x16x16xf32>
    %3 = vector.shape_cast %2 : vector<1x16x16xf32> to vector<16x16xf32>
    %cst = arith.constant dense<0.000000e+00> : vector<32x16xf32>
    %4 = tpu.matmul %0, %3, %cst {dimension_numbers = #tpu.dot_dimension_numbers<[1], [0], [0], [1], [0, 0, 1, 1], [], []>, precision = #tpu.contract_precision<fp32>} : vector<32x16xf32>, vector<16x16xf32>, vector<32x16xf32> -> vector<32x16xf32>
    %cst_6 = arith.constant dense<0.000000e+00> : vector<32x32xf32>
    %5 = tpu.matmul %4, %1, %cst_6 {dimension_numbers = #tpu.dot_dimension_numbers<[1], [0], [0], [1], [0, 0, 1, 1], [], []>, precision = #tpu.contract_precision<fp32>} : vector<32x16xf32>, vector<16x32xf32>, vector<32x32xf32> -> vector<32x32xf32>
    %c0_7 = arith.constant 0 : index
    %c0_8 = arith.constant 0 : index
    %c0_9 = arith.constant 0 : index
    %6 = vector.load %arg4[%c0_7, %c0_8, %c0_9] : memref<4x32x32xf32, #tpu.memory_space<vmem>>, vector<1x32x32xf32>
    %7 = vector.shape_cast %6 : vector<1x32x32xf32> to vector<32x32xf32>
    %8 = vector.shape_cast %5 : vector<32x32xf32> to vector<1x32x32xf32>
    tpu.vector_store %arg4[%c0_7, %c0_8, %c0_9], %8 {strides = array<i32>} : memref<4x32x32xf32, #tpu.memory_space<vmem>>, vector<1x32x32xf32>,
    %c1 = arith.constant 1 : index
    %c0_10 = arith.constant 0 : index
    %c0_11 = arith.constant 0 : index
    %9 = vector.load %arg1[%c1, %c0_10, %c0_11] : memref<4x16x16xf32, #tpu.memory_space<vmem>>, vector<1x16x16xf32>
    %10 = vector.shape_cast %9 : vector<1x16x16xf32> to vector<16x16xf32>
    %cst_12 = arith.constant dense<0.000000e+00> : vector<32x16xf32>
    %11 = tpu.matmul %0, %10, %cst_12 {dimension_numbers = #tpu.dot_dimension_numbers<[1], [0], [0], [1], [0, 0, 1, 1], [], []>, precision = #tpu.contract_precision<fp32>} : vector<32x16xf32>, vector<16x16xf32>, vector<32x16xf32> -> vector<32x16xf32>
    %cst_13 = arith.constant dense<0.000000e+00> : vector<32x32xf32>
    %12 = tpu.matmul %11, %1, %cst_13 {dimension_numbers = #tpu.dot_dimension_numbers<[1], [0], [0], [1], [0, 0, 1, 1], [], []>, precision = #tpu.contract_precision<fp32>} : vector<32x16xf32>, vector<16x32xf32>, vector<32x32xf32> -> vector<32x32xf32>
    %c1_14 = arith.constant 1 : index
    %c0_15 = arith.constant 0 : index
    %c0_16 = arith.constant 0 : index
    %13 = vector.load %arg4[%c1_14, %c0_15, %c0_16] : memref<4x32x32xf32, #tpu.memory_space<vmem>>, vector<1x32x32xf32>
    %14 = vector.shape_cast %13 : vector<1x32x32xf32> to vector<32x32xf32>
    %15 = vector.shape_cast %12 : vector<32x32xf32> to vector<1x32x32xf32>
    tpu.vector_store %arg4[%c1_14, %c0_15, %c0_16], %15 {strides = array<i32>} : memref<4x32x32xf32, #tpu.memory_space<vmem>>, vector<1x32x32xf32>,
    %c2 = arith.constant 2 : index
    %c0_17 = arith.constant 0 : index
    %c0_18 = arith.constant 0 : index
    %16 = vector.load %arg1[%c2, %c0_17, %c0_18] : memref<4x16x16xf32, #tpu.memory_space<vmem>>, vector<1x16x16xf32>
    %17 = vector.shape_cast %16 : vector<1x16x16xf32> to vector<16x16xf32>
    %cst_19 = arith.constant dense<0.000000e+00> : vector<32x16xf32>
    %18 = tpu.matmul %0, %17, %cst_19 {dimension_numbers = #tpu.dot_dimension_numbers<[1], [0], [0], [1], [0, 0, 1, 1], [], []>, precision = #tpu.contract_precision<fp32>} : vector<32x16xf32>, vector<16x16xf32>, vector<32x16xf32> -> vector<32x16xf32>
    %cst_20 = arith.constant dense<0.000000e+00> : vector<32x32xf32>
    %19 = tpu.matmul %18, %1, %cst_20 {dimension_numbers = #tpu.dot_dimension_numbers<[1], [0], [0], [1], [0, 0, 1, 1], [], []>, precision = #tpu.contract_precision<fp32>} : vector<32x16xf32>, vector<16x32xf32>, vector<32x32xf32> -> vector<32x32xf32>
    %c2_21 = arith.constant 2 : index
    %c0_22 = arith.constant 0 : index
    %c0_23 = arith.constant 0 : index
    %20 = vector.load %arg4[%c2_21, %c0_22, %c0_23] : memref<4x32x32xf32, #tpu.memory_space<vmem>>, vector<1x32x32xf32>
    %21 = vector.shape_cast %20 : vector<1x32x32xf32> to vector<32x32xf32>
    %22 = vector.shape_cast %19 : vector<32x32xf32> to vector<1x32x32xf32>
    tpu.vector_store %arg4[%c2_21, %c0_22, %c0_23], %22 {strides = array<i32>} : memref<4x32x32xf32, #tpu.memory_space<vmem>>, vector<1x32x32xf32>,
    %c3 = arith.constant 3 : index
    %c0_24 = arith.constant 0 : index
    %c0_25 = arith.constant 0 : index
    %23 = vector.load %arg1[%c3, %c0_24, %c0_25] : memref<4x16x16xf32, #tpu.memory_space<vmem>>, vector<1x16x16xf32>
    %24 = vector.shape_cast %23 : vector<1x16x16xf32> to vector<16x16xf32>
    %cst_26 = arith.constant dense<0.000000e+00> : vector<32x16xf32>
    %25 = tpu.matmul %0, %24, %cst_26 {dimension_numbers = #tpu.dot_dimension_numbers<[1], [0], [0], [1], [0, 0, 1, 1], [], []>, precision = #tpu.contract_precision<fp32>} : vector<32x16xf32>, vector<16x16xf32>, vector<32x16xf32> -> vector<32x16xf32>
    %cst_27 = arith.constant dense<0.000000e+00> : vector<32x32xf32>
    %26 = tpu.matmul %25, %1, %cst_27 {dimension_numbers = #tpu.dot_dimension_numbers<[1], [0], [0], [1], [0, 0, 1, 1], [], []>, precision = #tpu.contract_precision<fp32>} : vector<32x16xf32>, vector<16x32xf32>, vector<32x32xf32> -> vector<32x32xf32>
    %c3_28 = arith.constant 3 : index
    %c0_29 = arith.constant 0 : index
    %c0_30 = arith.constant 0 : index
    %27 = vector.load %arg4[%c3_28, %c0_29, %c0_30] : memref<4x32x32xf32, #tpu.memory_space<vmem>>, vector<1x32x32xf32>
    %28 = vector.shape_cast %27 : vector<1x32x32xf32> to vector<32x32xf32>
    %29 = vector.shape_cast %26 : vector<32x32xf32> to vector<1x32x32xf32>
    tpu.vector_store %arg4[%c3_28, %c0_29, %c0_30], %29 {strides = array<i32>} : memref<4x32x32xf32, #tpu.memory_space<vmem>>, vector<1x32x32xf32>,
    return
  }
  func.func @transform_0(%arg0: i32) -> (i32, i32, i32) {
    %c0_i32 = arith.constant 0 : i32
    %c0_i32_0 = arith.constant 0 : i32
    %c0_i32_1 = arith.constant 0 : i32
    return %arg0, %c0_i32, %c0_i32_0 : i32, i32, i32
  }
  func.func @transform_1(%arg0: i32) -> (i32, i32) {
    %c0_i32 = arith.constant 0 : i32
    %c0_i32_0 = arith.constant 0 : i32
    %c0_i32_1 = arith.constant 0 : i32
    return %c0_i32, %c0_i32_0 : i32, i32
  }
  func.func @transform_2(%arg0: i32) -> (i32, i32) {
    %c0_i32 = arith.constant 0 : i32
    %c0_i32_0 = arith.constant 0 : i32
    %c0_i32_1 = arith.constant 0 : i32
    return %c0_i32, %c0_i32_0 : i32, i32
  }
  func.func @transform_3(%arg0: i32) -> (i32, i32, i32) {
    %c0_i32 = arith.constant 0 : i32
    %c0_i32_0 = arith.constant 0 : i32
    %c0_i32_1 = arith.constant 0 : i32
    return %arg0, %c0_i32, %c0_i32_0 : i32, i32, i32
  }
}

</mosaic_0001>

<llo_original>
// kernel: tpu_custom_call.1
$region0: #{tpu_custom_call.1}
  #allocation0 [shape = 'u32[]', space=smem, size = 0x4, offset = 0x4, fixed_abs, tag = 'smem constant byte address 0x4 - core index']
  #allocation1 [shape = 'u32[72,128]{1,0:T(1,128)}', space=vmem, size = 0x9000, scoped, tag = 'internal scratch']
  %s0 = inlined_call_operand.hbm [shape: f32[8,16,16], index: 0, kind: input, shape index: {}]
  %s1 = inlined_call_operand.vmem [shape: f32[32,16], index: 1, kind: input, shape index: {}]
  %s2 = inlined_call_operand.vmem [shape: f32[16,32], index: 2, kind: input, shape index: {}]
  %s3 = inlined_call_operand.hbm [shape: f32[8,32,32], index: 3, kind: output, shape index: {}]
  %s4 = sld [smem:[#allocation0]]
  $region49: #{tpu_custom_call.1} parent=0
    _
  %s6 = ssub.s32 1, %s4
  %s7 = scalar_select 0, %s6, %s4
  $region1: #{tpu_custom_call.1} parent=0
    #allocation2 [shape = 'u8[65536]{0}', space=vmem, size = 0x10000, scoped, tag = 'input window, operand 0']
    #allocation3 [shape = 's32[2]{0}', space=sflag, size = 0x8, scoped, tag = 'scoped memory for tpu_custom_call.1']
    #allocation4 [shape = 's32[2]{0}', space=sflag, size = 0x8, scoped, tag = 'scoped memory for tpu_custom_call.1']
    #allocation5 [shape = 'u8[131072]{0}', space=vmem, size = 0x20000, scoped, tag = 'output window, operand 0']
    %8 = vsyncpa [#allocation3], 0
    %s9 = scalar_lea.sflag [#allocation3], 1
    %10 = vsyncpa %s9, 0
    %11 = vsyncpa [#allocation4], 0
    %s12 = scalar_lea.sflag [#allocation4], 1
    %13 = vsyncpa %s12, 0
    loop: start=0, step=1, limit=4
    $region2: #{tpu_custom_call.1} parent=1 // loop_pre_header
      _
    $region3: #{tpu_custom_call.1} parent=1 // loop_header
      %s15 = sphi 0, %s19
      %p16 = scmp.ge.s32.totalorder %s15, 4
      %s25 = sphi 0, %s27
      %s28 = sphi 0, %s25
      %s29 = sphi 0, %s28
      %s45 = sphi 0, %s29
      %s49 = sphi 0, %s49
      %s51 = sphi 0, %s49
      %s52 = sphi 0, %s51
      %s66 = sphi 0, %s52
      %s70 = sphi 0, %s70
      %s72 = sphi 0, %s70
      %s73 = sphi 0, %s72
      %s87 = sphi 0, %s73
      %s93 = sphi 0, %s95
      %s96 = sphi 0, %s93
      %s97 = sphi 0, %s96
      %s113 = sphi 0, %s97
    $region4: #{tpu_custom_call.1} parent=1 // loop_header_branch
      %18 = sbr.rel (%p16) target = $region8
    $region5: #{tpu_custom_call.1} parent=1 // loop_body
      %s20 = ssub.s32 %s15, 1
      %s21 = ssub.s32 %s15, 2
      %s22 = sadd.s32 %s15, 1
      %s23 = ssub.s32 %s15, %s22
      %p24 = scmp.eq.s32.totalorder %s23, 0
      %s26 = sadd.s32 %s25, 1
      %s27 = scalar_select %p24, %s25, %s26
      %p30 = pneg %p24
      %p31 = scmp.eq.s32.totalorder %s15, 1
      %p32 = por %p30, %p31
      %p33 = scmp.ne.s32.totalorder %s25, %s28
      %p34 = scmp.eq.s32.totalorder %s15, 0
      %p35 = por %p33, %p34
      %p36 = scmp.ne.s32.totalorder %s25, %s28
      %p37 = scmp.eq.s32.totalorder %s20, 1
      %p38 = por %p36, %p37
      %p39 = scmp.ne.s32.totalorder %s28, %s29
      %p40 = scmp.eq.s32.totalorder %s20, 0
      %p41 = por %p39, %p40
      %p42 = scmp.ne.s32.totalorder %s28, %s29
      %p43 = scmp.eq.s32.totalorder %s21, 1
      %p44 = por %p42, %p43
      %p46 = scmp.ne.s32.totalorder %s29, %s45
      %p47 = scmp.eq.s32.totalorder %s21, 0
      %p48 = por %p46, %p47
      %s50 = sadd.s32 %s49, 1
      %p53 = scmp.eq.s32.totalorder %s15, 1
      %p54 = scmp.ne.s32.totalorder %s49, %s51
      %p55 = scmp.eq.s32.totalorder %s15, 0
      %p56 = por %p54, %p55
      %p57 = scmp.ne.s32.totalorder %s49, %s51
      %p58 = scmp.eq.s32.totalorder %s20, 1
      %p59 = por %p57, %p58
      %p60 = scmp.ne.s32.totalorder %s51, %s52
      %p61 = scmp.eq.s32.totalorder %s20, 0
      %p62 = por %p60, %p61
      %p63 = scmp.ne.s32.totalorder %s51, %s52
      %p64 = scmp.eq.s32.totalorder %s21, 1
      %p65 = por %p63, %p64
      %p67 = scmp.ne.s32.totalorder %s52, %s66
      %p68 = scmp.eq.s32.totalorder %s21, 0
      %p69 = por %p67, %p68
      %s71 = sadd.s32 %s70, 1
      %p74 = scmp.eq.s32.totalorder %s15, 1
      %p75 = scmp.ne.s32.totalorder %s70, %s72
      %p76 = scmp.eq.s32.totalorder %s15, 0
      %p77 = por %p75, %p76
      %p78 = scmp.ne.s32.totalorder %s70, %s72
      %p79 = scmp.eq.s32.totalorder %s20, 1
      %p80 = por %p78, %p79
      %p81 = scmp.ne.s32.totalorder %s72, %s73
      %p82 = scmp.eq.s32.totalorder %s20, 0
      %p83 = por %p81, %p82
      %p84 = scmp.ne.s32.totalorder %s72, %s73
      %p85 = scmp.eq.s32.totalorder %s21, 1
      %p86 = por %p84, %p85
      %p88 = scmp.ne.s32.totalorder %s73, %s87
      %p89 = scmp.eq.s32.totalorder %s21, 0
      %p90 = por %p88, %p89
      %s91 = ssub.s32 %s15, %s22
      %p92 = scmp.eq.s32.totalorder %s91, 0
      %s94 = sadd.s32 %s93, 1
      %s95 = scalar_select %p92, %s93, %s94
      %p98 = pneg %p92
      %p99 = scmp.eq.s32.totalorder %s15, 1
      %p100 = por %p98, %p99
      %p101 = scmp.ne.s32.totalorder %s93, %s96
      %p102 = scmp.eq.s32.totalorder %s15, 0
      %p103 = por %p101, %p102
      %p104 = scmp.ne.s32.totalorder %s93, %s96
      %p105 = scmp.eq.s32.totalorder %s20, 1
      %p106 = por %p104, %p105
      %p107 = scmp.ne.s32.totalorder %s96, %s97
      %p108 = scmp.eq.s32.totalorder %s20, 0
      %p109 = por %p107, %p108
      %p110 = scmp.ne.s32.totalorder %s96, %s97
      %p111 = scmp.eq.s32.totalorder %s21, 1
      %p112 = por %p110, %p111
      %p114 = scmp.ne.s32.totalorder %s97, %s113
      %p115 = scmp.eq.s32.totalorder %s21, 0
      %p116 = por %p114, %p115
      %p117 = scmp.le.s32.totalorder 1, %s15
      %p118 = scmp.lt.s32.totalorder %s15, 3
      %p119 = pnand %p117, %p118
      %p120 = pneg %p119
      // Predicated region
      $region9: #{tpu_custom_call.1} parent=5 // pred_check
        _
      $region10: #{tpu_custom_call.1} parent=5 // pred_check_branch
        %122 = sbr.rel (%p119) target = $region12
      $region11: #{tpu_custom_call.1} parent=5 // pred_region
        %s123 = ssub.s32 %s15, 1
        // Predicated region
        $region13: #{tpu_custom_call.1} parent=11 // pred_check
          %p124 = pneg %p62
        $region14: #{tpu_custom_call.1} parent=11 // pred_check_branch
          %126 = sbr.rel (%p124) target = $region16
        $region15: #{tpu_custom_call.1} parent=11 // pred_region
          _
        $region16: #{tpu_custom_call.1} parent=11 // pred_fallthru
          _
        // Predicated region
        $region17: #{tpu_custom_call.1} parent=11 // pred_check
          %p127 = pneg %p83
        $region18: #{tpu_custom_call.1} parent=11 // pred_check_branch
          %129 = sbr.rel (%p127) target = $region20
        $region19: #{tpu_custom_call.1} parent=11 // pred_region
          _
        $region20: #{tpu_custom_call.1} parent=11 // pred_fallthru
          _
      $region12: #{tpu_custom_call.1} parent=5 // pred_fallthru
        _
      %p130 = scmp.lt.s32.totalorder %s15, 2
      // Predicated region
      $region21: #{tpu_custom_call.1} parent=5 // pred_check
        %p131 = pneg %p130
      $region22: #{tpu_custom_call.1} parent=5 // pred_check_branch
        %133 = sbr.rel (%p131) target = $region24
      $region23: #{tpu_custom_call.1} parent=5 // pred_region
        // Predicated region
        $region25: #{tpu_custom_call.1} parent=23 // pred_check
          %p134 = pneg %p35
        $region26: #{tpu_custom_call.1} parent=23 // pred_check_branch
          %136 = sbr.rel (%p134) target = $region28
        $region27: #{tpu_custom_call.1} parent=23 // pred_region
          %s137 = sand.u32 %s25, 1
          %s138 = scalar_lea.sflag [#allocation3], %s137
          %s139 = sand.u32 %s25, 1
          %s140 = smul.addr %s139, 64
          %s141 = scalar_lea.vmem [#allocation2], %s140
          %s142 = smul.u32 4, %s15
          %144 = vsyncadd %s138, 0
          %s145 = smul.addr %s142, 2
          %s146 = smul.addr %s145, 8
          %s147 = scalar_lea.hbm %s0, %s146
          %s148 = sshll.u32 %s147, 4
          %s149 = int_to_ptr.hbm [resolvable:$true] %s148
          %s150 = sshll.u32 %s141, 4
          %s151 = int_to_ptr.vmem [resolvable:$true] %s150
          %156 = dma.hbm_to_vmem [thread:$0]  %s149, 1024, %s151, %s138, 128, 128, 8
        $region28: #{tpu_custom_call.1} parent=23 // pred_fallthru
          _
      $region24: #{tpu_custom_call.1} parent=5 // pred_fallthru
        _
      %p157 = scmp.le.s32.totalorder 1, %s15
      %p158 = scmp.lt.s32.totalorder %s15, 3
      %p159 = pnand %p157, %p158
      %p160 = pneg %p159
      // Predicated region
      $region29: #{tpu_custom_call.1} parent=5 // pred_check
        _
      $region30: #{tpu_custom_call.1} parent=5 // pred_check_branch
        %162 = sbr.rel (%p159) target = $region32
      $region31: #{tpu_custom_call.1} parent=5 // pred_region
        %s163 = ssub.s32 %s15, 1
        %s164 = sand.u32 %s28, 1
        %s165 = scalar_lea.sflag [#allocation3], %s164
        %s166 = sand.u32 %s28, 1
        %s167 = smul.addr %s166, 64
        %s168 = scalar_lea.vmem [#allocation2], %s167
        // Predicated region
        $region33: #{tpu_custom_call.1} parent=31 // pred_check
          %p169 = pneg %p41
        $region34: #{tpu_custom_call.1} parent=31 // pred_check_branch
          %171 = sbr.rel (%p169) target = $region36
        $region35: #{tpu_custom_call.1} parent=31 // pred_region
          %173 = dma.done %s165, 1024
        $region36: #{tpu_custom_call.1} parent=31 // pred_fallthru
          _
        %s174 = sand.u32 %s28, 1
        %s175 = scalar_lea.sflag [#allocation3], %s174
        %s176 = sand.u32 %s28, 1
        %s177 = smul.addr %s176, 64
        %s178 = scalar_lea.vmem [#allocation2], %s177
        %p179 = pneg %p41
        %p180 = pneg %p38
        %p181 = pneg %p62
        %p182 = pneg %p59
        %p183 = pneg %p83
        %p184 = pneg %p80
        %p185 = pneg %p109
        %p186 = pneg %p106
        %s187 = sand.u32 %s96, 1
        %s188 = scalar_lea.sflag [#allocation4], %s187
        %s189 = sand.u32 %s96, 1
        %s190 = smul.addr %s189, 128
        %s191 = scalar_lea.vmem [#allocation5], %s190
        %s192 = smul.u32 4, %s20
        %s193 = smul.u32 4, %s20
        %v194 = vld [vmem:[%s1] sm:$0xff]
        %v195 = vld [vmem:[%s1 + $0x8] sm:$0xff]
        %v196 = vld [vmem:[%s1 + $0x10] sm:$0xff]
        %v197 = vld [vmem:[%s1 + $0x18] sm:$0xff]
        %v198 = vld [vmem:[%s2] sm:$0xff]
        %v199 = vld [vmem:[%s2 + $0x8] sm:$0xff]
        %v200 = vld [vmem:[%s168] sm:$0xff]
        %v201 = vld [vmem:[%s168 + $0x8] sm:$0xff]
        %vm202 = vcmask 130048
        %v204 = vsel %vm202, %v194, 0
        %v207 = vsel %vm202, %v195, 0
        %v210 = vsel %vm202, %v196, 0
        %v213 = vsel %vm202, %v197, 0
        %215 = vmatpush.msra.mxu0 0.0
        %216 = vmatpush.msra.mxu0 0.0
        %217 = vmatpush.msra.mxu0 0.0
        %218 = vmatpush.msra.mxu0 0.0
        %219 = vmatpush.msra.mxu0 0.0
        %220 = vmatpush.msra.mxu0 0.0
        %221 = vmatpush.msra.mxu0 0.0
        %222 = vmatpush.msra.mxu0 0.0
        %223 = vmatpush.msra.mxu0 0.0
        %224 = vmatpush.msra.mxu0 0.0
        %225 = vmatpush.msra.mxu0 0.0
        %226 = vmatpush.msra.mxu0 0.0
        %227 = vmatpush.msra.mxu0 0.0
        %228 = vmatpush.msra.mxu0 0.0
        %v229 = vand.u32 %v201, 4294901760
        %230 = vmatpush.msra.mxu0 %v229
        %v231 = vand.u32 %v200, 4294901760
        %232 = vmatpush.msra.mxu0 %v231
        %v233 = vand.u32 %v204, 4294901760
        %v234 = vsub.f32 %v204, %v233
        %v235 = vand.u32 %v234, 4294901760
        %v236 = vsub.f32 %v234, %v235
        %v237 = vand.u32 %v236, 4294901760
        %238 = vmatmul.f32.gmra.mxu0 %v237
        %v239 = vpop.f32.mrf.mxu0
        %v240 = vadd.f32 0.0, %v239
        %v241 = vand.u32 %v207, 4294901760
        %v242 = vsub.f32 %v207, %v241
        %v243 = vand.u32 %v242, 4294901760
        %v244 = vsub.f32 %v242, %v243
        %v245 = vand.u32 %v244, 4294901760
        %246 = vmatmul.f32.gmra.mxu0 %v245
        %v247 = vpop.f32.mrf.mxu0
        %v248 = vadd.f32 0.0, %v247
        %v249 = vand.u32 %v210, 4294901760
        %v250 = vsub.f32 %v210, %v249
        %v251 = vand.u32 %v250, 4294901760
        %v252 = vsub.f32 %v250, %v251
        %v253 = vand.u32 %v252, 4294901760
        %254 = vmatmul.f32.gmra.mxu0 %v253
        %v255 = vpop.f32.mrf.mxu0
        %v256 = vadd.f32 0.0, %v255
        %v257 = vand.u32 %v213, 4294901760
        %v258 = vsub.f32 %v213, %v257
        %v259 = vand.u32 %v258, 4294901760
        %v260 = vsub.f32 %v258, %v259
        %v261 = vand.u32 %v260, 4294901760
        %262 = vmatmul.f32.gmra.mxu0 %v261
        %v263 = vpop.f32.mrf.mxu0
        %v264 = vadd.f32 0.0, %v263
        %265 = vdwg.mxu0
        %266 = vmatpush.msra.mxu0 0.0
        %267 = vmatpush.msra.mxu0 0.0
        %268 = vmatpush.msra.mxu0 0.0
        %269 = vmatpush.msra.mxu0 0.0
        %270 = vmatpush.msra.mxu0 0.0
        %271 = vmatpush.msra.mxu0 0.0
        %272 = vmatpush.msra.mxu0 0.0
        %273 = vmatpush.msra.mxu0 0.0
        %274 = vmatpush.msra.mxu0 0.0
        %275 = vmatpush.msra.mxu0 0.0
        %276 = vmatpush.msra.mxu0 0.0
        %277 = vmatpush.msra.mxu0 0.0
        %278 = vmatpush.msra.mxu0 0.0
        %279 = vmatpush.msra.mxu0 0.0
        %v280 = vand.u32 %v201, 4294901760
        %v281 = vsub.f32 %v201, %v280
        %v282 = vand.u32 %v281, 4294901760
        %v283 = vsub.f32 %v281, %v282
        %v284 = vand.u32 %v283, 4294901760
        %285 = vmatpush.msra.mxu0 %v284
        %v286 = vand.u32 %v200, 4294901760
        %v287 = vsub.f32 %v200, %v286
        %v288 = vand.u32 %v287, 4294901760
        %v289 = vsub.f32 %v287, %v288
        %v290 = vand.u32 %v289, 4294901760
        %291 = vmatpush.msra.mxu0 %v290
        %v292 = vand.u32 %v204, 4294901760
        %293 = vmatmul.f32.gmra.mxu0 %v292
        %v294 = vpop.f32.mrf.mxu0
        %v295 = vadd.f32 %v240, %v294
        %v296 = vand.u32 %v207, 4294901760
        %297 = vmatmul.f32.gmra.mxu0 %v296
        %v298 = vpop.f32.mrf.mxu0
        %v299 = vadd.f32 %v248, %v298
        %v300 = vand.u32 %v210, 4294901760
        %301 = vmatmul.f32.gmra.mxu0 %v300
        %v302 = vpop.f32.mrf.mxu0
        %v303 = vadd.f32 %v256, %v302
        %v304 = vand.u32 %v213, 4294901760
        %305 = vmatmul.f32.gmra.mxu0 %v304
        %v306 = vpop.f32.mrf.mxu0
        %v307 = vadd.f32 %v264, %v306
        %308 = vdwg.mxu0
        %309 = vmatpush.msra.mxu0 0.0
        %310 = vmatpush.msra.mxu0 0.0
        %311 = vmatpush.msra.mxu0 0.0
        %312 = vmatpush.msra.mxu0 0.0
        %313 = vmatpush.msra.mxu0 0.0
        %314 = vmatpush.msra.mxu0 0.0
        %315 = vmatpush.msra.mxu0 0.0
        %316 = vmatpush.msra.mxu0 0.0
        %317 = vmatpush.msra.mxu0 0.0
        %318 = vmatpush.msra.mxu0 0.0
        %319 = vmatpush.msra.mxu0 0.0
        %320 = vmatpush.msra.mxu0 0.0
        %321 = vmatpush.msra.mxu0 0.0
        %322 = vmatpush.msra.mxu0 0.0
        %v323 = vand.u32 %v201, 4294901760
        %v324 = vsub.f32 %v201, %v323
        %325 = vmatpush.msra.mxu0 %v324
        %v326 = vand.u32 %v200, 4294901760
        %v327 = vsub.f32 %v200, %v326
        %328 = vmatpush.msra.mxu0 %v327
        %v329 = vand.u32 %v204, 4294901760
        %v330 = vsub.f32 %v204, %v329
        %331 = vmatmul.f32.gmra.mxu0 %v330
        %v332 = vpop.f32.mrf.mxu0
        %v333 = vadd.f32 %v295, %v332
        %v334 = vand.u32 %v207, 4294901760
        %v335 = vsub.f32 %v207, %v334
        %336 = vmatmul.f32.gmra.mxu0 %v335
        %v337 = vpop.f32.mrf.mxu0
        %v338 = vadd.f32 %v299, %v337
        %v339 = vand.u32 %v210, 4294901760
        %v340 = vsub.f32 %v210, %v339
        %341 = vmatmul.f32.gmra.mxu0 %v340
        %v342 = vpop.f32.mrf.mxu0
        %v343 = vadd.f32 %v303, %v342
        %v344 = vand.u32 %v213, 4294901760
        %v345 = vsub.f32 %v213, %v344
        %346 = vmatmul.f32.gmra.mxu0 %v345
        %v347 = vpop.f32.mrf.mxu0
        %v348 = vadd.f32 %v307, %v347
        %349 = vdwg.mxu0
        %350 = vmatpush.msra.mxu0 0.0
        %351 = vmatpush.msra.mxu0 0.0
        %352 = vmatpush.msra.mxu0 0.0
        %353 = vmatpush.msra.mxu0 0.0
        %354 = vmatpush.msra.mxu0 0.0
        %355 = vmatpush.msra.mxu0 0.0
        %356 = vmatpush.msra.mxu0 0.0
        %357 = vmatpush.msra.mxu0 0.0
        %358 = vmatpush.msra.mxu0 0.0
        %359 = vmatpush.msra.mxu0 0.0
        %360 = vmatpush.msra.mxu0 0.0
        %361 = vmatpush.msra.mxu0 0.0
        %362 = vmatpush.msra.mxu0 0.0
        %363 = vmatpush.msra.mxu0 0.0
        %v364 = vand.u32 %v201, 4294901760
        %365 = vmatpush.msra.mxu0 %v364
        %v366 = vand.u32 %v200, 4294901760
        %367 = vmatpush.msra.mxu0 %v366
        %v368 = vand.u32 %v204, 4294901760
        %v369 = vsub.f32 %v204, %v368
        %v370 = vand.u32 %v369, 4294901760
        %371 = vmatmul.f32.gmra.mxu0 %v370
        %v372 = vpop.f32.mrf.mxu0
        %v373 = vadd.f32 %v333, %v372
        %v374 = vand.u32 %v207, 4294901760
        %v375 = vsub.f32 %v207, %v374
        %v376 = vand.u32 %v375, 4294901760
        %377 = vmatmul.f32.gmra.mxu0 %v376
        %v378 = vpop.f32.mrf.mxu0
        %v379 = vadd.f32 %v338, %v378
        %v380 = vand.u32 %v210, 4294901760
        %v381 = vsub.f32 %v210, %v380
        %v382 = vand.u32 %v381, 4294901760
        %383 = vmatmul.f32.gmra.mxu0 %v382
        %v384 = vpop.f32.mrf.mxu0
        %v385 = vadd.f32 %v343, %v384
        %v386 = vand.u32 %v213, 4294901760
        %v387 = vsub.f32 %v213, %v386
        %v388 = vand.u32 %v387, 4294901760
        %389 = vmatmul.f32.gmra.mxu0 %v388
        %v390 = vpop.f32.mrf.mxu0
        %v391 = vadd.f32 %v348, %v390
        %392 = vdwg.mxu0
        %393 = vmatpush.msra.mxu0 0.0
        %394 = vmatpush.msra.mxu0 0.0
        %395 = vmatpush.msra.mxu0 0.0
        %396 = vmatpush.msra.mxu0 0.0
        %397 = vmatpush.msra.mxu0 0.0
        %398 = vmatpush.msra.mxu0 0.0
        %399 = vmatpush.msra.mxu0 0.0
        %400 = vmatpush.msra.mxu0 0.0
        %401 = vmatpush.msra.mxu0 0.0
        %402 = vmatpush.msra.mxu0 0.0
        %403 = vmatpush.msra.mxu0 0.0
        %404 = vmatpush.msra.mxu0 0.0
        %405 = vmatpush.msra.mxu0 0.0
        %406 = vmatpush.msra.mxu0 0.0
        %v407 = vand.u32 %v201, 4294901760
        %v408 = vsub.f32 %v201, %v407
        %v409 = vand.u32 %v408, 4294901760
        %410 = vmatpush.msra.mxu0 %v409
        %v411 = vand.u32 %v200, 4294901760
        %v412 = vsub.f32 %v200, %v411
        %v413 = vand.u32 %v412, 4294901760
        %414 = vmatpush.msra.mxu0 %v413
        %v415 = vand.u32 %v204, 4294901760
        %416 = vmatmul.f32.gmra.mxu0 %v415
        %v417 = vpop.f32.mrf.mxu0
        %v418 = vadd.f32 %v373, %v417
        %v419 = vand.u32 %v207, 4294901760
        %420 = vmatmul.f32.gmra.mxu0 %v419
        %v421 = vpop.f32.mrf.mxu0
        %v422 = vadd.f32 %v379, %v421
        %v423 = vand.u32 %v210, 4294901760
        %424 = vmatmul.f32.gmra.mxu0 %v423
        %v425 = vpop.f32.mrf.mxu0
        %v426 = vadd.f32 %v385, %v425
        %v427 = vand.u32 %v213, 4294901760
        %428 = vmatmul.f32.gmra.mxu0 %v427
        %v429 = vpop.f32.mrf.mxu0
        %v430 = vadd.f32 %v391, %v429
        %431 = vdwg.mxu0
        %432 = vmatpush.msra.mxu0 0.0
        %433 = vmatpush.msra.mxu0 0.0
        %434 = vmatpush.msra.mxu0 0.0
        %435 = vmatpush.msra.mxu0 0.0
        %436 = vmatpush.msra.mxu0 0.0
        %437 = vmatpush.msra.mxu0 0.0
        %438 = vmatpush.msra.mxu0 0.0
        %439 = vmatpush.msra.mxu0 0.0
        %440 = vmatpush.msra.mxu0 0.0
        %441 = vmatpush.msra.mxu0 0.0
        %442 = vmatpush.msra.mxu0 0.0
        %443 = vmatpush.msra.mxu0 0.0
        %444 = vmatpush.msra.mxu0 0.0
        %445 = vmatpush.msra.mxu0 0.0
        %v446 = vand.u32 %v201, 4294901760
        %447 = vmatpush.msra.mxu0 %v446
        %v448 = vand.u32 %v200, 4294901760
        %449 = vmatpush.msra.mxu0 %v448
        %v450 = vand.u32 %v204, 4294901760
        %451 = vmatmul.f32.gmra.mxu0 %v450
        %v452 = vpop.f32.mrf.mxu0
        %v453 = vadd.f32 %v418, %v452
        %v454 = vand.u32 %v207, 4294901760
        %455 = vmatmul.f32.gmra.mxu0 %v454
        %v456 = vpop.f32.mrf.mxu0
        %v457 = vadd.f32 %v422, %v456
        %v458 = vand.u32 %v210, 4294901760
        %459 = vmatmul.f32.gmra.mxu0 %v458
        %v460 = vpop.f32.mrf.mxu0
        %v461 = vadd.f32 %v426, %v460
        %v462 = vand.u32 %v213, 4294901760
        %463 = vmatmul.f32.gmra.mxu0 %v462
        %v464 = vpop.f32.mrf.mxu0
        %v465 = vadd.f32 %v430, %v464
        %466 = vdwg.mxu0
        %v468 = vsel %vm202, %v453, 0
        %v471 = vsel %vm202, %v457, 0
        %v474 = vsel %vm202, %v461, 0
        %v477 = vsel %vm202, %v465, 0
        %479 = vmatpush.msra.mxu0 0.0
        %480 = vmatpush.msra.mxu0 0.0
        %481 = vmatpush.msra.mxu0 0.0
        %482 = vmatpush.msra.mxu0 0.0
        %483 = vmatpush.msra.mxu0 0.0
        %484 = vmatpush.msra.mxu0 0.0
        %485 = vmatpush.msra.mxu0 0.0
        %486 = vmatpush.msra.mxu0 0.0
        %487 = vmatpush.msra.mxu0 0.0
        %488 = vmatpush.msra.mxu0 0.0
        %489 = vmatpush.msra.mxu0 0.0
        %490 = vmatpush.msra.mxu0 0.0
        %491 = vmatpush.msra.mxu0 0.0
        %492 = vmatpush.msra.mxu0 0.0
        %v493 = vand.u32 %v199, 4294901760
        %494 = vmatpush.msra.mxu0 %v493
        %v495 = vand.u32 %v198, 4294901760
        %496 = vmatpush.msra.mxu0 %v495
        %v497 = vand.u32 %v468, 4294901760
        %v498 = vsub.f32 %v468, %v497
        %v499 = vand.u32 %v498, 4294901760
        %v500 = vsub.f32 %v498, %v499
        %v501 = vand.u32 %v500, 4294901760
        %502 = vmatmul.f32.gmra.mxu0 %v501
        %v503 = vpop.f32.mrf.mxu0
        %v504 = vadd.f32 0.0, %v503
        %v505 = vand.u32 %v471, 4294901760
        %v506 = vsub.f32 %v471, %v505
        %v507 = vand.u32 %v506, 4294901760
        %v508 = vsub.f32 %v506, %v507
        %v509 = vand.u32 %v508, 4294901760
        %510 = vmatmul.f32.gmra.mxu0 %v509
        %v511 = vpop.f32.mrf.mxu0
        %v512 = vadd.f32 0.0, %v511
        %v513 = vand.u32 %v474, 4294901760
        %v514 = vsub.f32 %v474, %v513
        %v515 = vand.u32 %v514, 4294901760
        %v516 = vsub.f32 %v514, %v515
        %v517 = vand.u32 %v516, 4294901760
        %518 = vmatmul.f32.gmra.mxu0 %v517
        %v519 = vpop.f32.mrf.mxu0
        %v520 = vadd.f32 0.0, %v519
        %v521 = vand.u32 %v477, 4294901760
        %v522 = vsub.f32 %v477, %v521
        %v523 = vand.u32 %v522, 4294901760
        %v524 = vsub.f32 %v522, %v523
        %v525 = vand.u32 %v524, 4294901760
        %526 = vmatmul.f32.gmra.mxu0 %v525
        %v527 = vpop.f32.mrf.mxu0
        %v528 = vadd.f32 0.0, %v527
        %529 = vdwg.mxu0
        %530 = vmatpush.msra.mxu0 0.0
        %531 = vmatpush.msra.mxu0 0.0
        %532 = vmatpush.msra.mxu0 0.0
        %533 = vmatpush.msra.mxu0 0.0
        %534 = vmatpush.msra.mxu0 0.0
        %535 = vmatpush.msra.mxu0 0.0
        %536 = vmatpush.msra.mxu0 0.0
        %537 = vmatpush.msra.mxu0 0.0
        %538 = vmatpush.msra.mxu0 0.0
        %539 = vmatpush.msra.mxu0 0.0
        %540 = vmatpush.msra.mxu0 0.0
        %541 = vmatpush.msra.mxu0 0.0
        %542 = vmatpush.msra.mxu0 0.0
        %543 = vmatpush.msra.mxu0 0.0
        %v544 = vand.u32 %v199, 4294901760
        %v545 = vsub.f32 %v199, %v544
        %v546 = vand.u32 %v545, 4294901760
        %v547 = vsub.f32 %v545, %v546
        %v548 = vand.u32 %v547, 4294901760
        %549 = vmatpush.msra.mxu0 %v548
        %v550 = vand.u32 %v198, 4294901760
        %v551 = vsub.f32 %v198, %v550
        %v552 = vand.u32 %v551, 4294901760
        %v553 = vsub.f32 %v551, %v552
        %v554 = vand.u32 %v553, 4294901760
        %555 = vmatpush.msra.mxu0 %v554
        %v556 = vand.u32 %v468, 4294901760
        %557 = vmatmul.f32.gmra.mxu0 %v556
        %v558 = vpop.f32.mrf.mxu0
        %v559 = vadd.f32 %v504, %v558
        %v560 = vand.u32 %v471, 4294901760
        %561 = vmatmul.f32.gmra.mxu0 %v560
        %v562 = vpop.f32.mrf.mxu0
        %v563 = vadd.f32 %v512, %v562
        %v564 = vand.u32 %v474, 4294901760
        %565 = vmatmul.f32.gmra.mxu0 %v564
        %v566 = vpop.f32.mrf.mxu0
        %v567 = vadd.f32 %v520, %v566
        %v568 = vand.u32 %v477, 4294901760
        %569 = vmatmul.f32.gmra.mxu0 %v568
        %v570 = vpop.f32.mrf.mxu0
        %v571 = vadd.f32 %v528, %v570
        %572 = vdwg.mxu0
        %573 = vmatpush.msra.mxu0 0.0
        %574 = vmatpush.msra.mxu0 0.0
        %575 = vmatpush.msra.mxu0 0.0
        %576 = vmatpush.msra.mxu0 0.0
        %577 = vmatpush.msra.mxu0 0.0
        %578 = vmatpush.msra.mxu0 0.0
        %579 = vmatpush.msra.mxu0 0.0
        %580 = vmatpush.msra.mxu0 0.0
        %581 = vmatpush.msra.mxu0 0.0
        %582 = vmatpush.msra.mxu0 0.0
        %583 = vmatpush.msra.mxu0 0.0
        %584 = vmatpush.msra.mxu0 0.0
        %585 = vmatpush.msra.mxu0 0.0
        %586 = vmatpush.msra.mxu0 0.0
        %v587 = vand.u32 %v199, 4294901760
        %v588 = vsub.f32 %v199, %v587
        %589 = vmatpush.msra.mxu0 %v588
        %v590 = vand.u32 %v198, 4294901760
        %v591 = vsub.f32 %v198, %v590
        %592 = vmatpush.msra.mxu0 %v591
        %v593 = vand.u32 %v468, 4294901760
        %v594 = vsub.f32 %v468, %v593
        %595 = vmatmul.f32.gmra.mxu0 %v594
        %v596 = vpop.f32.mrf.mxu0
        %v597 = vadd.f32 %v559, %v596
        %v598 = vand.u32 %v471, 4294901760
        %v599 = vsub.f32 %v471, %v598
        %600 = vmatmul.f32.gmra.mxu0 %v599
        %v601 = vpop.f32.mrf.mxu0
        %v602 = vadd.f32 %v563, %v601
        %v603 = vand.u32 %v474, 4294901760
        %v604 = vsub.f32 %v474, %v603
        %605 = vmatmul.f32.gmra.mxu0 %v604
        %v606 = vpop.f32.mrf.mxu0
        %v607 = vadd.f32 %v567, %v606
        %v608 = vand.u32 %v477, 4294901760
        %v609 = vsub.f32 %v477, %v608
        %610 = vmatmul.f32.gmra.mxu0 %v609
        %v611 = vpop.f32.mrf.mxu0
        %v612 = vadd.f32 %v571, %v611
        %613 = vdwg.mxu0
        %614 = vmatpush.msra.mxu0 0.0
        %615 = vmatpush.msra.mxu0 0.0
        %616 = vmatpush.msra.mxu0 0.0
        %617 = vmatpush.msra.mxu0 0.0
        %618 = vmatpush.msra.mxu0 0.0
        %619 = vmatpush.msra.mxu0 0.0
        %620 = vmatpush.msra.mxu0 0.0
        %621 = vmatpush.msra.mxu0 0.0
        %622 = vmatpush.msra.mxu0 0.0
        %623 = vmatpush.msra.mxu0 0.0
        %624 = vmatpush.msra.mxu0 0.0
        %625 = vmatpush.msra.mxu0 0.0
        %626 = vmatpush.msra.mxu0 0.0
        %627 = vmatpush.msra.mxu0 0.0
        %v628 = vand.u32 %v199, 4294901760
        %629 = vmatpush.msra.mxu0 %v628
        %v630 = vand.u32 %v198, 4294901760
        %631 = vmatpush.msra.mxu0 %v630
        %v632 = vand.u32 %v468, 4294901760
        %v633 = vsub.f32 %v468, %v632
        %v634 = vand.u32 %v633, 4294901760
        %635 = vmatmul.f32.gmra.mxu0 %v634
        %v636 = vpop.f32.mrf.mxu0
        %v637 = vadd.f32 %v597, %v636
        %v638 = vand.u32 %v471, 4294901760
        %v639 = vsub.f32 %v471, %v638
        %v640 = vand.u32 %v639, 4294901760
        %641 = vmatmul.f32.gmra.mxu0 %v640
        %v642 = vpop.f32.mrf.mxu0
        %v643 = vadd.f32 %v602, %v642
        %v644 = vand.u32 %v474, 4294901760
        %v645 = vsub.f32 %v474, %v644
        %v646 = vand.u32 %v645, 4294901760
        %647 = vmatmul.f32.gmra.mxu0 %v646
        %v648 = vpop.f32.mrf.mxu0
        %v649 = vadd.f32 %v607, %v648
        %v650 = vand.u32 %v477, 4294901760
        %v651 = vsub.f32 %v477, %v650
        %v652 = vand.u32 %v651, 4294901760
        %653 = vmatmul.f32.gmra.mxu0 %v652
        %v654 = vpop.f32.mrf.mxu0
        %v655 = vadd.f32 %v612, %v654
        %656 = vdwg.mxu0
        %657 = vmatpush.msra.mxu0 0.0
        %658 = vmatpush.msra.mxu0 0.0
        %659 = vmatpush.msra.mxu0 0.0
        %660 = vmatpush.msra.mxu0 0.0
        %661 = vmatpush.msra.mxu0 0.0
        %662 = vmatpush.msra.mxu0 0.0
        %663 = vmatpush.msra.mxu0 0.0
        %664 = vmatpush.msra.mxu0 0.0
        %665 = vmatpush.msra.mxu0 0.0
        %666 = vmatpush.msra.mxu0 0.0
        %667 = vmatpush.msra.mxu0 0.0
        %668 = vmatpush.msra.mxu0 0.0
        %669 = vmatpush.msra.mxu0 0.0
        %670 = vmatpush.msra.mxu0 0.0
        %v671 = vand.u32 %v199, 4294901760
        %v672 = vsub.f32 %v199, %v671
        %v673 = vand.u32 %v672, 4294901760
        %674 = vmatpush.msra.mxu0 %v673
        %v675 = vand.u32 %v198, 4294901760
        %v676 = vsub.f32 %v198, %v675
        %v677 = vand.u32 %v676, 4294901760
        %678 = vmatpush.msra.mxu0 %v677
        %v679 = vand.u32 %v468, 4294901760
        %680 = vmatmul.f32.gmra.mxu0 %v679
        %v681 = vpop.f32.mrf.mxu0
        %v682 = vadd.f32 %v637, %v681
        %v683 = vand.u32 %v471, 4294901760
        %684 = vmatmul.f32.gmra.mxu0 %v683
        %v685 = vpop.f32.mrf.mxu0
        %v686 = vadd.f32 %v643, %v685
        %v687 = vand.u32 %v474, 4294901760
        %688 = vmatmul.f32.gmra.mxu0 %v687
        %v689 = vpop.f32.mrf.mxu0
        %v690 = vadd.f32 %v649, %v689
        %v691 = vand.u32 %v477, 4294901760
        %692 = vmatmul.f32.gmra.mxu0 %v691
        %v693 = vpop.f32.mrf.mxu0
        %v694 = vadd.f32 %v655, %v693
        %695 = vdwg.mxu0
        %696 = vmatpush.msra.mxu0 0.0
        %697 = vmatpush.msra.mxu0 0.0
        %698 = vmatpush.msra.mxu0 0.0
        %699 = vmatpush.msra.mxu0 0.0
        %700 = vmatpush.msra.mxu0 0.0
        %701 = vmatpush.msra.mxu0 0.0
        %702 = vmatpush.msra.mxu0 0.0
        %703 = vmatpush.msra.mxu0 0.0
        %704 = vmatpush.msra.mxu0 0.0
        %705 = vmatpush.msra.mxu0 0.0
        %706 = vmatpush.msra.mxu0 0.0
        %707 = vmatpush.msra.mxu0 0.0
        %708 = vmatpush.msra.mxu0 0.0
        %709 = vmatpush.msra.mxu0 0.0
        %v710 = vand.u32 %v199, 4294901760
        %711 = vmatpush.msra.mxu0 %v710
        %v712 = vand.u32 %v198, 4294901760
        %713 = vmatpush.msra.mxu0 %v712
        %v714 = vand.u32 %v468, 4294901760
        %715 = vmatmul.f32.gmra.mxu0 %v714
        %v716 = vpop.f32.mrf.mxu0
        %v717 = vadd.f32 %v682, %v716
        %v718 = vand.u32 %v471, 4294901760
        %719 = vmatmul.f32.gmra.mxu0 %v718
        %v720 = vpop.f32.mrf.mxu0
        %v721 = vadd.f32 %v686, %v720
        %v722 = vand.u32 %v474, 4294901760
        %723 = vmatmul.f32.gmra.mxu0 %v722
        %v724 = vpop.f32.mrf.mxu0
        %v725 = vadd.f32 %v690, %v724
        %v726 = vand.u32 %v477, 4294901760
        %727 = vmatmul.f32.gmra.mxu0 %v726
        %v728 = vpop.f32.mrf.mxu0
        %v729 = vadd.f32 %v694, %v728
        %730 = vdwg.mxu0
        %vm731 = vcmask 261120
        %732 = vst.msk [vmem:[%s191] sm:$0xff] %vm731, %v717
        %733 = vst.msk [vmem:[%s191 + $0x8] sm:$0xff] %vm731, %v721
        %734 = vst.msk [vmem:[%s191 + $0x10] sm:$0xff] %vm731, %v725
        %735 = vst.msk [vmem:[%s191 + $0x18] sm:$0xff] %vm731, %v729
        %s736 = scalar_lea.vmem %s168, 16 [#allocation2]
        %v737 = vld [vmem:[%s736] sm:$0xff]
        %v738 = vld [vmem:[%s736 + $0x8] sm:$0xff]
        %739 = vmatpush.msra.mxu0 0.0
        %740 = vmatpush.msra.mxu0 0.0
        %741 = vmatpush.msra.mxu0 0.0
        %742 = vmatpush.msra.mxu0 0.0
        %743 = vmatpush.msra.mxu0 0.0
        %744 = vmatpush.msra.mxu0 0.0
        %745 = vmatpush.msra.mxu0 0.0
        %746 = vmatpush.msra.mxu0 0.0
        %747 = vmatpush.msra.mxu0 0.0
        %748 = vmatpush.msra.mxu0 0.0
        %749 = vmatpush.msra.mxu0 0.0
        %750 = vmatpush.msra.mxu0 0.0
        %751 = vmatpush.msra.mxu0 0.0
        %752 = vmatpush.msra.mxu0 0.0
        %v753 = vand.u32 %v738, 4294901760
        %754 = vmatpush.msra.mxu0 %v753
        %v755 = vand.u32 %v737, 4294901760
        %756 = vmatpush.msra.mxu0 %v755
        %v757 = vand.u32 %v204, 4294901760
        %v758 = vsub.f32 %v204, %v757
        %v759 = vand.u32 %v758, 4294901760
        %v760 = vsub.f32 %v758, %v759
        %v761 = vand.u32 %v760, 4294901760
        %762 = vmatmul.f32.gmra.mxu0 %v761
        %v763 = vpop.f32.mrf.mxu0
        %v764 = vadd.f32 0.0, %v763
        %v765 = vand.u32 %v207, 4294901760
        %v766 = vsub.f32 %v207, %v765
        %v767 = vand.u32 %v766, 4294901760
        %v768 = vsub.f32 %v766, %v767
        %v769 = vand.u32 %v768, 4294901760
        %770 = vmatmul.f32.gmra.mxu0 %v769
        %v771 = vpop.f32.mrf.mxu0
        %v772 = vadd.f32 0.0, %v771
        %v773 = vand.u32 %v210, 4294901760
        %v774 = vsub.f32 %v210, %v773
        %v775 = vand.u32 %v774, 4294901760
        %v776 = vsub.f32 %v774, %v775
        %v777 = vand.u32 %v776, 4294901760
        %778 = vmatmul.f32.gmra.mxu0 %v777
        %v779 = vpop.f32.mrf.mxu0
        %v780 = vadd.f32 0.0, %v779
        %v781 = vand.u32 %v213, 4294901760
        %v782 = vsub.f32 %v213, %v781
        %v783 = vand.u32 %v782, 4294901760
        %v784 = vsub.f32 %v782, %v783
        %v785 = vand.u32 %v784, 4294901760
        %786 = vmatmul.f32.gmra.mxu0 %v785
        %v787 = vpop.f32.mrf.mxu0
        %v788 = vadd.f32 0.0, %v787
        %789 = vdwg.mxu0
        %790 = vmatpush.msra.mxu0 0.0
        %791 = vmatpush.msra.mxu0 0.0
        %792 = vmatpush.msra.mxu0 0.0
        %793 = vmatpush.msra.mxu0 0.0
        %794 = vmatpush.msra.mxu0 0.0
        %795 = vmatpush.msra.mxu0 0.0
        %796 = vmatpush.msra.mxu0 0.0
        %797 = vmatpush.msra.mxu0 0.0
        %798 = vmatpush.msra.mxu0 0.0
        %799 = vmatpush.msra.mxu0 0.0
        %800 = vmatpush.msra.mxu0 0.0
        %801 = vmatpush.msra.mxu0 0.0
        %802 = vmatpush.msra.mxu0 0.0
        %803 = vmatpush.msra.mxu0 0.0
        %v804 = vand.u32 %v738, 4294901760
        %v805 = vsub.f32 %v738, %v804
        %v806 = vand.u32 %v805, 4294901760
        %v807 = vsub.f32 %v805, %v806
        %v808 = vand.u32 %v807, 4294901760
        %809 = vmatpush.msra.mxu0 %v808
        %v810 = vand.u32 %v737, 4294901760
        %v811 = vsub.f32 %v737, %v810
        %v812 = vand.u32 %v811, 4294901760
        %v813 = vsub.f32 %v811, %v812
        %v814 = vand.u32 %v813, 4294901760
        %815 = vmatpush.msra.mxu0 %v814
        %v816 = vand.u32 %v204, 4294901760
        %817 = vmatmul.f32.gmra.mxu0 %v816
        %v818 = vpop.f32.mrf.mxu0
        %v819 = vadd.f32 %v764, %v818
        %v820 = vand.u32 %v207, 4294901760
        %821 = vmatmul.f32.gmra.mxu0 %v820
        %v822 = vpop.f32.mrf.mxu0
        %v823 = vadd.f32 %v772, %v822
        %v824 = vand.u32 %v210, 4294901760
        %825 = vmatmul.f32.gmra.mxu0 %v824
        %v826 = vpop.f32.mrf.mxu0
        %v827 = vadd.f32 %v780, %v826
        %v828 = vand.u32 %v213, 4294901760
        %829 = vmatmul.f32.gmra.mxu0 %v828
        %v830 = vpop.f32.mrf.mxu0
        %v831 = vadd.f32 %v788, %v830
        %832 = vdwg.mxu0
        %833 = vmatpush.msra.mxu0 0.0
        %834 = vmatpush.msra.mxu0 0.0
        %835 = vmatpush.msra.mxu0 0.0
        %836 = vmatpush.msra.mxu0 0.0
        %837 = vmatpush.msra.mxu0 0.0
        %838 = vmatpush.msra.mxu0 0.0
        %839 = vmatpush.msra.mxu0 0.0
        %840 = vmatpush.msra.mxu0 0.0
        %841 = vmatpush.msra.mxu0 0.0
        %842 = vmatpush.msra.mxu0 0.0
        %843 = vmatpush.msra.mxu0 0.0
        %844 = vmatpush.msra.mxu0 0.0
        %845 = vmatpush.msra.mxu0 0.0
        %846 = vmatpush.msra.mxu0 0.0
        %v847 = vand.u32 %v738, 4294901760
        %v848 = vsub.f32 %v738, %v847
        %849 = vmatpush.msra.mxu0 %v848
        %v850 = vand.u32 %v737, 4294901760
        %v851 = vsub.f32 %v737, %v850
        %852 = vmatpush.msra.mxu0 %v851
        %v853 = vand.u32 %v204, 4294901760
        %v854 = vsub.f32 %v204, %v853
        %855 = vmatmul.f32.gmra.mxu0 %v854
        %v856 = vpop.f32.mrf.mxu0
        %v857 = vadd.f32 %v819, %v856
        %v858 = vand.u32 %v207, 4294901760
        %v859 = vsub.f32 %v207, %v858
        %860 = vmatmul.f32.gmra.mxu0 %v859
        %v861 = vpop.f32.mrf.mxu0
        %v862 = vadd.f32 %v823, %v861
        %v863 = vand.u32 %v210, 4294901760
        %v864 = vsub.f32 %v210, %v863
        %865 = vmatmul.f32.gmra.mxu0 %v864
        %v866 = vpop.f32.mrf.mxu0
        %v867 = vadd.f32 %v827, %v866
        %v868 = vand.u32 %v213, 4294901760
        %v869 = vsub.f32 %v213, %v868
        %870 = vmatmul.f32.gmra.mxu0 %v869
        %v871 = vpop.f32.mrf.mxu0
        %v872 = vadd.f32 %v831, %v871
        %873 = vdwg.mxu0
        %874 = vmatpush.msra.mxu0 0.0
        %875 = vmatpush.msra.mxu0 0.0
        %876 = vmatpush.msra.mxu0 0.0
        %877 = vmatpush.msra.mxu0 0.0
        %878 = vmatpush.msra.mxu0 0.0
        %879 = vmatpush.msra.mxu0 0.0
        %880 = vmatpush.msra.mxu0 0.0
        %881 = vmatpush.msra.mxu0 0.0
        %882 = vmatpush.msra.mxu0 0.0
        %883 = vmatpush.msra.mxu0 0.0
        %884 = vmatpush.msra.mxu0 0.0
        %885 = vmatpush.msra.mxu0 0.0
        %886 = vmatpush.msra.mxu0 0.0
        %887 = vmatpush.msra.mxu0 0.0
        %v888 = vand.u32 %v738, 4294901760
        %889 = vmatpush.msra.mxu0 %v888
        %v890 = vand.u32 %v737, 4294901760
        %891 = vmatpush.msra.mxu0 %v890
        %v892 = vand.u32 %v204, 4294901760
        %v893 = vsub.f32 %v204, %v892
        %v894 = vand.u32 %v893, 4294901760
        %895 = vmatmul.f32.gmra.mxu0 %v894
        %v896 = vpop.f32.mrf.mxu0
        %v897 = vadd.f32 %v857, %v896
        %v898 = vand.u32 %v207, 4294901760
        %v899 = vsub.f32 %v207, %v898
        %v900 = vand.u32 %v899, 4294901760
        %901 = vmatmul.f32.gmra.mxu0 %v900
        %v902 = vpop.f32.mrf.mxu0
        %v903 = vadd.f32 %v862, %v902
        %v904 = vand.u32 %v210, 4294901760
        %v905 = vsub.f32 %v210, %v904
        %v906 = vand.u32 %v905, 4294901760
        %907 = vmatmul.f32.gmra.mxu0 %v906
        %v908 = vpop.f32.mrf.mxu0
        %v909 = vadd.f32 %v867, %v908
        %v910 = vand.u32 %v213, 4294901760
        %v911 = vsub.f32 %v213, %v910
        %v912 = vand.u32 %v911, 4294901760
        %913 = vmatmul.f32.gmra.mxu0 %v912
        %v914 = vpop.f32.mrf.mxu0
        %v915 = vadd.f32 %v872, %v914
        %916 = vdwg.mxu0
        %917 = vmatpush.msra.mxu0 0.0
        %918 = vmatpush.msra.mxu0 0.0
        %919 = vmatpush.msra.mxu0 0.0
        %920 = vmatpush.msra.mxu0 0.0
        %921 = vmatpush.msra.mxu0 0.0
        %922 = vmatpush.msra.mxu0 0.0
        %923 = vmatpush.msra.mxu0 0.0
        %924 = vmatpush.msra.mxu0 0.0
        %925 = vmatpush.msra.mxu0 0.0
        %926 = vmatpush.msra.mxu0 0.0
        %927 = vmatpush.msra.mxu0 0.0
        %928 = vmatpush.msra.mxu0 0.0
        %929 = vmatpush.msra.mxu0 0.0
        %930 = vmatpush.msra.mxu0 0.0
        %v931 = vand.u32 %v738, 4294901760
        %v932 = vsub.f32 %v738, %v931
        %v933 = vand.u32 %v932, 4294901760
        %934 = vmatpush.msra.mxu0 %v933
        %v935 = vand.u32 %v737, 4294901760
        %v936 = vsub.f32 %v737, %v935
        %v937 = vand.u32 %v936, 4294901760
        %938 = vmatpush.msra.mxu0 %v937
        %v939 = vand.u32 %v204, 4294901760
        %940 = vmatmul.f32.gmra.mxu0 %v939
        %v941 = vpop.f32.mrf.mxu0
        %v942 = vadd.f32 %v897, %v941
        %v943 = vand.u32 %v207, 4294901760
        %944 = vmatmul.f32.gmra.mxu0 %v943
        %v945 = vpop.f32.mrf.mxu0
        %v946 = vadd.f32 %v903, %v945
        %v947 = vand.u32 %v210, 4294901760
        %948 = vmatmul.f32.gmra.mxu0 %v947
        %v949 = vpop.f32.mrf.mxu0
        %v950 = vadd.f32 %v909, %v949
        %v951 = vand.u32 %v213, 4294901760
        %952 = vmatmul.f32.gmra.mxu0 %v951
        %v953 = vpop.f32.mrf.mxu0
        %v954 = vadd.f32 %v915, %v953
        %955 = vdwg.mxu0
        %956 = vmatpush.msra.mxu0 0.0
        %957 = vmatpush.msra.mxu0 0.0
        %958 = vmatpush.msra.mxu0 0.0
        %959 = vmatpush.msra.mxu0 0.0
        %960 = vmatpush.msra.mxu0 0.0
        %961 = vmatpush.msra.mxu0 0.0
        %962 = vmatpush.msra.mxu0 0.0
        %963 = vmatpush.msra.mxu0 0.0
        %964 = vmatpush.msra.mxu0 0.0
        %965 = vmatpush.msra.mxu0 0.0
        %966 = vmatpush.msra.mxu0 0.0
        %967 = vmatpush.msra.mxu0 0.0
        %968 = vmatpush.msra.mxu0 0.0
        %969 = vmatpush.msra.mxu0 0.0
        %v970 = vand.u32 %v738, 4294901760
        %971 = vmatpush.msra.mxu0 %v970
        %v972 = vand.u32 %v737, 4294901760
        %973 = vmatpush.msra.mxu0 %v972
        %v974 = vand.u32 %v204, 4294901760
        %975 = vmatmul.f32.gmra.mxu0 %v974
        %v976 = vpop.f32.mrf.mxu0
        %v977 = vadd.f32 %v942, %v976
        %v978 = vand.u32 %v207, 4294901760
        %979 = vmatmul.f32.gmra.mxu0 %v978
        %v980 = vpop.f32.mrf.mxu0
        %v981 = vadd.f32 %v946, %v980
        %v982 = vand.u32 %v210, 4294901760
        %983 = vmatmul.f32.gmra.mxu0 %v982
        %v984 = vpop.f32.mrf.mxu0
        %v985 = vadd.f32 %v950, %v984
        %v986 = vand.u32 %v213, 4294901760
        %987 = vmatmul.f32.gmra.mxu0 %v986
        %v988 = vpop.f32.mrf.mxu0
        %v989 = vadd.f32 %v954, %v988
        %990 = vdwg.mxu0
        %v992 = vsel %vm202, %v977, 0
        %v995 = vsel %vm202, %v981, 0
        %v998 = vsel %vm202, %v985, 0
        %v1001 = vsel %vm202, %v989, 0
        %1003 = vmatpush.msra.mxu0 0.0
        %1004 = vmatpush.msra.mxu0 0.0
        %1005 = vmatpush.msra.mxu0 0.0
        %1006 = vmatpush.msra.mxu0 0.0
        %1007 = vmatpush.msra.mxu0 0.0
        %1008 = vmatpush.msra.mxu0 0.0
        %1009 = vmatpush.msra.mxu0 0.0
        %1010 = vmatpush.msra.mxu0 0.0
        %1011 = vmatpush.msra.mxu0 0.0
        %1012 = vmatpush.msra.mxu0 0.0
        %1013 = vmatpush.msra.mxu0 0.0
        %1014 = vmatpush.msra.mxu0 0.0
        %1015 = vmatpush.msra.mxu0 0.0
        %1016 = vmatpush.msra.mxu0 0.0
        %v1017 = vand.u32 %v199, 4294901760
        %1018 = vmatpush.msra.mxu0 %v1017
        %v1019 = vand.u32 %v198, 4294901760
        %1020 = vmatpush.msra.mxu0 %v1019
        %v1021 = vand.u32 %v992, 4294901760
        %v1022 = vsub.f32 %v992, %v1021
        %v1023 = vand.u32 %v1022, 4294901760
        %v1024 = vsub.f32 %v1022, %v1023
        %v1025 = vand.u32 %v1024, 4294901760
        %1026 = vmatmul.f32.gmra.mxu0 %v1025
        %v1027 = vpop.f32.mrf.mxu0
        %v1028 = vadd.f32 0.0, %v1027
        %v1029 = vand.u32 %v995, 4294901760
        %v1030 = vsub.f32 %v995, %v1029
        %v1031 = vand.u32 %v1030, 4294901760
        %v1032 = vsub.f32 %v1030, %v1031
        %v1033 = vand.u32 %v1032, 4294901760
        %1034 = vmatmul.f32.gmra.mxu0 %v1033
        %v1035 = vpop.f32.mrf.mxu0
        %v1036 = vadd.f32 0.0, %v1035
        %v1037 = vand.u32 %v998, 4294901760
        %v1038 = vsub.f32 %v998, %v1037
        %v1039 = vand.u32 %v1038, 4294901760
        %v1040 = vsub.f32 %v1038, %v1039
        %v1041 = vand.u32 %v1040, 4294901760
        %1042 = vmatmul.f32.gmra.mxu0 %v1041
        %v1043 = vpop.f32.mrf.mxu0
        %v1044 = vadd.f32 0.0, %v1043
        %v1045 = vand.u32 %v1001, 4294901760
        %v1046 = vsub.f32 %v1001, %v1045
        %v1047 = vand.u32 %v1046, 4294901760
        %v1048 = vsub.f32 %v1046, %v1047
        %v1049 = vand.u32 %v1048, 4294901760
        %1050 = vmatmul.f32.gmra.mxu0 %v1049
        %v1051 = vpop.f32.mrf.mxu0
        %v1052 = vadd.f32 0.0, %v1051
        %1053 = vdwg.mxu0
        %1054 = vmatpush.msra.mxu0 0.0
        %1055 = vmatpush.msra.mxu0 0.0
        %1056 = vmatpush.msra.mxu0 0.0
        %1057 = vmatpush.msra.mxu0 0.0
        %1058 = vmatpush.msra.mxu0 0.0
        %1059 = vmatpush.msra.mxu0 0.0
        %1060 = vmatpush.msra.mxu0 0.0
        %1061 = vmatpush.msra.mxu0 0.0
        %1062 = vmatpush.msra.mxu0 0.0
        %1063 = vmatpush.msra.mxu0 0.0
        %1064 = vmatpush.msra.mxu0 0.0
        %1065 = vmatpush.msra.mxu0 0.0
        %1066 = vmatpush.msra.mxu0 0.0
        %1067 = vmatpush.msra.mxu0 0.0
        %v1068 = vand.u32 %v199, 4294901760
        %v1069 = vsub.f32 %v199, %v1068
        %v1070 = vand.u32 %v1069, 4294901760
        %v1071 = vsub.f32 %v1069, %v1070
        %v1072 = vand.u32 %v1071, 4294901760
        %1073 = vmatpush.msra.mxu0 %v1072
        %v1074 = vand.u32 %v198, 4294901760
        %v1075 = vsub.f32 %v198, %v1074
        %v1076 = vand.u32 %v1075, 4294901760
        %v1077 = vsub.f32 %v1075, %v1076
        %v1078 = vand.u32 %v1077, 4294901760
        %1079 = vmatpush.msra.mxu0 %v1078
        %v1080 = vand.u32 %v992, 4294901760
        %1081 = vmatmul.f32.gmra.mxu0 %v1080
        %v1082 = vpop.f32.mrf.mxu0
        %v1083 = vadd.f32 %v1028, %v1082
        %v1084 = vand.u32 %v995, 4294901760
        %1085 = vmatmul.f32.gmra.mxu0 %v1084
        %v1086 = vpop.f32.mrf.mxu0
        %v1087 = vadd.f32 %v1036, %v1086
        %v1088 = vand.u32 %v998, 4294901760
        %1089 = vmatmul.f32.gmra.mxu0 %v1088
        %v1090 = vpop.f32.mrf.mxu0
        %v1091 = vadd.f32 %v1044, %v1090
        %v1092 = vand.u32 %v1001, 4294901760
        %1093 = vmatmul.f32.gmra.mxu0 %v1092
        %v1094 = vpop.f32.mrf.mxu0
        %v1095 = vadd.f32 %v1052, %v1094
        %1096 = vdwg.mxu0
        %1097 = vmatpush.msra.mxu0 0.0
        %1098 = vmatpush.msra.mxu0 0.0
        %1099 = vmatpush.msra.mxu0 0.0
        %1100 = vmatpush.msra.mxu0 0.0
        %1101 = vmatpush.msra.mxu0 0.0
        %1102 = vmatpush.msra.mxu0 0.0
        %1103 = vmatpush.msra.mxu0 0.0
        %1104 = vmatpush.msra.mxu0 0.0
        %1105 = vmatpush.msra.mxu0 0.0
        %1106 = vmatpush.msra.mxu0 0.0
        %1107 = vmatpush.msra.mxu0 0.0
        %1108 = vmatpush.msra.mxu0 0.0
        %1109 = vmatpush.msra.mxu0 0.0
        %1110 = vmatpush.msra.mxu0 0.0
        %v1111 = vand.u32 %v199, 4294901760
        %v1112 = vsub.f32 %v199, %v1111
        %1113 = vmatpush.msra.mxu0 %v1112
        %v1114 = vand.u32 %v198, 4294901760
        %v1115 = vsub.f32 %v198, %v1114
        %1116 = vmatpush.msra.mxu0 %v1115
        %v1117 = vand.u32 %v992, 4294901760
        %v1118 = vsub.f32 %v992, %v1117
        %1119 = vmatmul.f32.gmra.mxu0 %v1118
        %v1120 = vpop.f32.mrf.mxu0
        %v1121 = vadd.f32 %v1083, %v1120
        %v1122 = vand.u32 %v995, 4294901760
        %v1123 = vsub.f32 %v995, %v1122
        %1124 = vmatmul.f32.gmra.mxu0 %v1123
        %v1125 = vpop.f32.mrf.mxu0
        %v1126 = vadd.f32 %v1087, %v1125
        %v1127 = vand.u32 %v998, 4294901760
        %v1128 = vsub.f32 %v998, %v1127
        %1129 = vmatmul.f32.gmra.mxu0 %v1128
        %v1130 = vpop.f32.mrf.mxu0
        %v1131 = vadd.f32 %v1091, %v1130
        %v1132 = vand.u32 %v1001, 4294901760
        %v1133 = vsub.f32 %v1001, %v1132
        %1134 = vmatmul.f32.gmra.mxu0 %v1133
        %v1135 = vpop.f32.mrf.mxu0
        %v1136 = vadd.f32 %v1095, %v1135
        %1137 = vdwg.mxu0
        %1138 = vmatpush.msra.mxu0 0.0
        %1139 = vmatpush.msra.mxu0 0.0
        %1140 = vmatpush.msra.mxu0 0.0
        %1141 = vmatpush.msra.mxu0 0.0
        %1142 = vmatpush.msra.mxu0 0.0
        %1143 = vmatpush.msra.mxu0 0.0
        %1144 = vmatpush.msra.mxu0 0.0
        %1145 = vmatpush.msra.mxu0 0.0
        %1146 = vmatpush.msra.mxu0 0.0
        %1147 = vmatpush.msra.mxu0 0.0
        %1148 = vmatpush.msra.mxu0 0.0
        %1149 = vmatpush.msra.mxu0 0.0
        %1150 = vmatpush.msra.mxu0 0.0
        %1151 = vmatpush.msra.mxu0 0.0
        %v1152 = vand.u32 %v199, 4294901760
        %1153 = vmatpush.msra.mxu0 %v1152
        %v1154 = vand.u32 %v198, 4294901760
        %1155 = vmatpush.msra.mxu0 %v1154
        %v1156 = vand.u32 %v992, 4294901760
        %v1157 = vsub.f32 %v992, %v1156
        %v1158 = vand.u32 %v1157, 4294901760
        %1159 = vmatmul.f32.gmra.mxu0 %v1158
        %v1160 = vpop.f32.mrf.mxu0
        %v1161 = vadd.f32 %v1121, %v1160
        %v1162 = vand.u32 %v995, 4294901760
        %v1163 = vsub.f32 %v995, %v1162
        %v1164 = vand.u32 %v1163, 4294901760
        %1165 = vmatmul.f32.gmra.mxu0 %v1164
        %v1166 = vpop.f32.mrf.mxu0
        %v1167 = vadd.f32 %v1126, %v1166
        %v1168 = vand.u32 %v998, 4294901760
        %v1169 = vsub.f32 %v998, %v1168
        %v1170 = vand.u32 %v1169, 4294901760
        %1171 = vmatmul.f32.gmra.mxu0 %v1170
        %v1172 = vpop.f32.mrf.mxu0
        %v1173 = vadd.f32 %v1131, %v1172
        %v1174 = vand.u32 %v1001, 4294901760
        %v1175 = vsub.f32 %v1001, %v1174
        %v1176 = vand.u32 %v1175, 4294901760
        %1177 = vmatmul.f32.gmra.mxu0 %v1176
        %v1178 = vpop.f32.mrf.mxu0
        %v1179 = vadd.f32 %v1136, %v1178
        %1180 = vdwg.mxu0
        %1181 = vmatpush.msra.mxu0 0.0
        %1182 = vmatpush.msra.mxu0 0.0
        %1183 = vmatpush.msra.mxu0 0.0
        %1184 = vmatpush.msra.mxu0 0.0
        %1185 = vmatpush.msra.mxu0 0.0
        %1186 = vmatpush.msra.mxu0 0.0
        %1187 = vmatpush.msra.mxu0 0.0
        %1188 = vmatpush.msra.mxu0 0.0
        %1189 = vmatpush.msra.mxu0 0.0
        %1190 = vmatpush.msra.mxu0 0.0
        %1191 = vmatpush.msra.mxu0 0.0
        %1192 = vmatpush.msra.mxu0 0.0
        %1193 = vmatpush.msra.mxu0 0.0
        %1194 = vmatpush.msra.mxu0 0.0
        %v1195 = vand.u32 %v199, 4294901760
        %v1196 = vsub.f32 %v199, %v1195
        %v1197 = vand.u32 %v1196, 4294901760
        %1198 = vmatpush.msra.mxu0 %v1197
        %v1199 = vand.u32 %v198, 4294901760
        %v1200 = vsub.f32 %v198, %v1199
        %v1201 = vand.u32 %v1200, 4294901760
        %1202 = vmatpush.msra.mxu0 %v1201
        %v1203 = vand.u32 %v992, 4294901760
        %1204 = vmatmul.f32.gmra.mxu0 %v1203
        %v1205 = vpop.f32.mrf.mxu0
        %v1206 = vadd.f32 %v1161, %v1205
        %v1207 = vand.u32 %v995, 4294901760
        %1208 = vmatmul.f32.gmra.mxu0 %v1207
        %v1209 = vpop.f32.mrf.mxu0
        %v1210 = vadd.f32 %v1167, %v1209
        %v1211 = vand.u32 %v998, 4294901760
        %1212 = vmatmul.f32.gmra.mxu0 %v1211
        %v1213 = vpop.f32.mrf.mxu0
        %v1214 = vadd.f32 %v1173, %v1213
        %v1215 = vand.u32 %v1001, 4294901760
        %1216 = vmatmul.f32.gmra.mxu0 %v1215
        %v1217 = vpop.f32.mrf.mxu0
        %v1218 = vadd.f32 %v1179, %v1217
        %1219 = vdwg.mxu0
        %1220 = vmatpush.msra.mxu0 0.0
        %1221 = vmatpush.msra.mxu0 0.0
        %1222 = vmatpush.msra.mxu0 0.0
        %1223 = vmatpush.msra.mxu0 0.0
        %1224 = vmatpush.msra.mxu0 0.0
        %1225 = vmatpush.msra.mxu0 0.0
        %1226 = vmatpush.msra.mxu0 0.0
        %1227 = vmatpush.msra.mxu0 0.0
        %1228 = vmatpush.msra.mxu0 0.0
        %1229 = vmatpush.msra.mxu0 0.0
        %1230 = vmatpush.msra.mxu0 0.0
        %1231 = vmatpush.msra.mxu0 0.0
        %1232 = vmatpush.msra.mxu0 0.0
        %1233 = vmatpush.msra.mxu0 0.0
        %v1234 = vand.u32 %v199, 4294901760
        %1235 = vmatpush.msra.mxu0 %v1234
        %v1236 = vand.u32 %v198, 4294901760
        %1237 = vmatpush.msra.mxu0 %v1236
        %v1238 = vand.u32 %v992, 4294901760
        %1239 = vmatmul.f32.gmra.mxu0 %v1238
        %v1240 = vpop.f32.mrf.mxu0
        %v1241 = vadd.f32 %v1206, %v1240
        %v1242 = vand.u32 %v995, 4294901760
        %1243 = vmatmul.f32.gmra.mxu0 %v1242
        %v1244 = vpop.f32.mrf.mxu0
        %v1245 = vadd.f32 %v1210, %v1244
        %v1246 = vand.u32 %v998, 4294901760
        %1247 = vmatmul.f32.gmra.mxu0 %v1246
        %v1248 = vpop.f32.mrf.mxu0
        %v1249 = vadd.f32 %v1214, %v1248
        %v1250 = vand.u32 %v1001, 4294901760
        %1251 = vmatmul.f32.gmra.mxu0 %v1250
        %v1252 = vpop.f32.mrf.mxu0
        %v1253 = vadd.f32 %v1218, %v1252
        %1254 = vdwg.mxu0
        %s1255 = scalar_lea.vmem %s191, 32 [#allocation5]
        %1256 = vst.msk [vmem:[%s1255] sm:$0xff] %vm731, %v1241
        %1257 = vst.msk [vmem:[%s1255 + $0x8] sm:$0xff] %vm731, %v1245
        %1258 = vst.msk [vmem:[%s1255 + $0x10] sm:$0xff] %vm731, %v1249
        %1259 = vst.msk [vmem:[%s1255 + $0x18] sm:$0xff] %vm731, %v1253
        %s1260 = scalar_lea.vmem %s168, 32 [#allocation2]
        %v1261 = vld [vmem:[%s1260] sm:$0xff]
        %v1262 = vld [vmem:[%s1260 + $0x8] sm:$0xff]
        %1263 = vmatpush.msra.mxu0 0.0
        %1264 = vmatpush.msra.mxu0 0.0
        %1265 = vmatpush.msra.mxu0 0.0
        %1266 = vmatpush.msra.mxu0 0.0
        %1267 = vmatpush.msra.mxu0 0.0
        %1268 = vmatpush.msra.mxu0 0.0
        %1269 = vmatpush.msra.mxu0 0.0
        %1270 = vmatpush.msra.mxu0 0.0
        %1271 = vmatpush.msra.mxu0 0.0
        %1272 = vmatpush.msra.mxu0 0.0
        %1273 = vmatpush.msra.mxu0 0.0
        %1274 = vmatpush.msra.mxu0 0.0
        %1275 = vmatpush.msra.mxu0 0.0
        %1276 = vmatpush.msra.mxu0 0.0
        %v1277 = vand.u32 %v1262, 4294901760
        %1278 = vmatpush.msra.mxu0 %v1277
        %v1279 = vand.u32 %v1261, 4294901760
        %1280 = vmatpush.msra.mxu0 %v1279
        %v1281 = vand.u32 %v204, 4294901760
        %v1282 = vsub.f32 %v204, %v1281
        %v1283 = vand.u32 %v1282, 4294901760
        %v1284 = vsub.f32 %v1282, %v1283
        %v1285 = vand.u32 %v1284, 4294901760
        %1286 = vmatmul.f32.gmra.mxu0 %v1285
        %v1287 = vpop.f32.mrf.mxu0
        %v1288 = vadd.f32 0.0, %v1287
        %v1289 = vand.u32 %v207, 4294901760
        %v1290 = vsub.f32 %v207, %v1289
        %v1291 = vand.u32 %v1290, 4294901760
        %v1292 = vsub.f32 %v1290, %v1291
        %v1293 = vand.u32 %v1292, 4294901760
        %1294 = vmatmul.f32.gmra.mxu0 %v1293
        %v1295 = vpop.f32.mrf.mxu0
        %v1296 = vadd.f32 0.0, %v1295
        %v1297 = vand.u32 %v210, 4294901760
        %v1298 = vsub.f32 %v210, %v1297
        %v1299 = vand.u32 %v1298, 4294901760
        %v1300 = vsub.f32 %v1298, %v1299
        %v1301 = vand.u32 %v1300, 4294901760
        %1302 = vmatmul.f32.gmra.mxu0 %v1301
        %v1303 = vpop.f32.mrf.mxu0
        %v1304 = vadd.f32 0.0, %v1303
        %v1305 = vand.u32 %v213, 4294901760
        %v1306 = vsub.f32 %v213, %v1305
        %v1307 = vand.u32 %v1306, 4294901760
        %v1308 = vsub.f32 %v1306, %v1307
        %v1309 = vand.u32 %v1308, 4294901760
        %1310 = vmatmul.f32.gmra.mxu0 %v1309
        %v1311 = vpop.f32.mrf.mxu0
        %v1312 = vadd.f32 0.0, %v1311
        %1313 = vdwg.mxu0
        %1314 = vmatpush.msra.mxu0 0.0
        %1315 = vmatpush.msra.mxu0 0.0
        %1316 = vmatpush.msra.mxu0 0.0
        %1317 = vmatpush.msra.mxu0 0.0
        %1318 = vmatpush.msra.mxu0 0.0
        %1319 = vmatpush.msra.mxu0 0.0
        %1320 = vmatpush.msra.mxu0 0.0
        %1321 = vmatpush.msra.mxu0 0.0
        %1322 = vmatpush.msra.mxu0 0.0
        %1323 = vmatpush.msra.mxu0 0.0
        %1324 = vmatpush.msra.mxu0 0.0
        %1325 = vmatpush.msra.mxu0 0.0
        %1326 = vmatpush.msra.mxu0 0.0
        %1327 = vmatpush.msra.mxu0 0.0
        %v1328 = vand.u32 %v1262, 4294901760
        %v1329 = vsub.f32 %v1262, %v1328
        %v1330 = vand.u32 %v1329, 4294901760
        %v1331 = vsub.f32 %v1329, %v1330
        %v1332 = vand.u32 %v1331, 4294901760
        %1333 = vmatpush.msra.mxu0 %v1332
        %v1334 = vand.u32 %v1261, 4294901760
        %v1335 = vsub.f32 %v1261, %v1334
        %v1336 = vand.u32 %v1335, 4294901760
        %v1337 = vsub.f32 %v1335, %v1336
        %v1338 = vand.u32 %v1337, 4294901760
        %1339 = vmatpush.msra.mxu0 %v1338
        %v1340 = vand.u32 %v204, 4294901760
        %1341 = vmatmul.f32.gmra.mxu0 %v1340
        %v1342 = vpop.f32.mrf.mxu0
        %v1343 = vadd.f32 %v1288, %v1342
        %v1344 = vand.u32 %v207, 4294901760
        %1345 = vmatmul.f32.gmra.mxu0 %v1344
        %v1346 = vpop.f32.mrf.mxu0
        %v1347 = vadd.f32 %v1296, %v1346
        %v1348 = vand.u32 %v210, 4294901760
        %1349 = vmatmul.f32.gmra.mxu0 %v1348
        %v1350 = vpop.f32.mrf.mxu0
        %v1351 = vadd.f32 %v1304, %v1350
        %v1352 = vand.u32 %v213, 4294901760
        %1353 = vmatmul.f32.gmra.mxu0 %v1352
        %v1354 = vpop.f32.mrf.mxu0
        %v1355 = vadd.f32 %v1312, %v1354
        %1356 = vdwg.mxu0
        %1357 = vmatpush.msra.mxu0 0.0
        %1358 = vmatpush.msra.mxu0 0.0
        %1359 = vmatpush.msra.mxu0 0.0
        %1360 = vmatpush.msra.mxu0 0.0
        %1361 = vmatpush.msra.mxu0 0.0
        %1362 = vmatpush.msra.mxu0 0.0
        %1363 = vmatpush.msra.mxu0 0.0
        %1364 = vmatpush.msra.mxu0 0.0
        %1365 = vmatpush.msra.mxu0 0.0
        %1366 = vmatpush.msra.mxu0 0.0
        %1367 = vmatpush.msra.mxu0 0.0
        %1368 = vmatpush.msra.mxu0 0.0
        %1369 = vmatpush.msra.mxu0 0.0
        %1370 = vmatpush.msra.mxu0 0.0
        %v1371 = vand.u32 %v1262, 4294901760
        %v1372 = vsub.f32 %v1262, %v1371
        %1373 = vmatpush.msra.mxu0 %v1372
        %v1374 = vand.u32 %v1261, 4294901760
        %v1375 = vsub.f32 %v1261, %v1374
        %1376 = vmatpush.msra.mxu0 %v1375
        %v1377 = vand.u32 %v204, 4294901760
        %v1378 = vsub.f32 %v204, %v1377
        %1379 = vmatmul.f32.gmra.mxu0 %v1378
        %v1380 = vpop.f32.mrf.mxu0
        %v1381 = vadd.f32 %v1343, %v1380
        %v1382 = vand.u32 %v207, 4294901760
        %v1383 = vsub.f32 %v207, %v1382
        %1384 = vmatmul.f32.gmra.mxu0 %v1383
        %v1385 = vpop.f32.mrf.mxu0
        %v1386 = vadd.f32 %v1347, %v1385
        %v1387 = vand.u32 %v210, 4294901760
        %v1388 = vsub.f32 %v210, %v1387
        %1389 = vmatmul.f32.gmra.mxu0 %v1388
        %v1390 = vpop.f32.mrf.mxu0
        %v1391 = vadd.f32 %v1351, %v1390
        %v1392 = vand.u32 %v213, 4294901760
        %v1393 = vsub.f32 %v213, %v1392
        %1394 = vmatmul.f32.gmra.mxu0 %v1393
        %v1395 = vpop.f32.mrf.mxu0
        %v1396 = vadd.f32 %v1355, %v1395
        %1397 = vdwg.mxu0
        %1398 = vmatpush.msra.mxu0 0.0
        %1399 = vmatpush.msra.mxu0 0.0
        %1400 = vmatpush.msra.mxu0 0.0
        %1401 = vmatpush.msra.mxu0 0.0
        %1402 = vmatpush.msra.mxu0 0.0
        %1403 = vmatpush.msra.mxu0 0.0
        %1404 = vmatpush.msra.mxu0 0.0
        %1405 = vmatpush.msra.mxu0 0.0
        %1406 = vmatpush.msra.mxu0 0.0
        %1407 = vmatpush.msra.mxu0 0.0
        %1408 = vmatpush.msra.mxu0 0.0
        %1409 = vmatpush.msra.mxu0 0.0
        %1410 = vmatpush.msra.mxu0 0.0
        %1411 = vmatpush.msra.mxu0 0.0
        %v1412 = vand.u32 %v1262, 4294901760
        %1413 = vmatpush.msra.mxu0 %v1412
        %v1414 = vand.u32 %v1261, 4294901760
        %1415 = vmatpush.msra.mxu0 %v1414
        %v1416 = vand.u32 %v204, 4294901760
        %v1417 = vsub.f32 %v204, %v1416
        %v1418 = vand.u32 %v1417, 4294901760
        %1419 = vmatmul.f32.gmra.mxu0 %v1418
        %v1420 = vpop.f32.mrf.mxu0
        %v1421 = vadd.f32 %v1381, %v1420
        %v1422 = vand.u32 %v207, 4294901760
        %v1423 = vsub.f32 %v207, %v1422
        %v1424 = vand.u32 %v1423, 4294901760
        %1425 = vmatmul.f32.gmra.mxu0 %v1424
        %v1426 = vpop.f32.mrf.mxu0
        %v1427 = vadd.f32 %v1386, %v1426
        %v1428 = vand.u32 %v210, 4294901760
        %v1429 = vsub.f32 %v210, %v1428
        %v1430 = vand.u32 %v1429, 4294901760
        %1431 = vmatmul.f32.gmra.mxu0 %v1430
        %v1432 = vpop.f32.mrf.mxu0
        %v1433 = vadd.f32 %v1391, %v1432
        %v1434 = vand.u32 %v213, 4294901760
        %v1435 = vsub.f32 %v213, %v1434
        %v1436 = vand.u32 %v1435, 4294901760
        %1437 = vmatmul.f32.gmra.mxu0 %v1436
        %v1438 = vpop.f32.mrf.mxu0
        %v1439 = vadd.f32 %v1396, %v1438
        %1440 = vdwg.mxu0
        %1441 = vmatpush.msra.mxu0 0.0
        %1442 = vmatpush.msra.mxu0 0.0
        %1443 = vmatpush.msra.mxu0 0.0
        %1444 = vmatpush.msra.mxu0 0.0
        %1445 = vmatpush.msra.mxu0 0.0
        %1446 = vmatpush.msra.mxu0 0.0
        %1447 = vmatpush.msra.mxu0 0.0
        %1448 = vmatpush.msra.mxu0 0.0
        %1449 = vmatpush.msra.mxu0 0.0
        %1450 = vmatpush.msra.mxu0 0.0
        %1451 = vmatpush.msra.mxu0 0.0
        %1452 = vmatpush.msra.mxu0 0.0
        %1453 = vmatpush.msra.mxu0 0.0
        %1454 = vmatpush.msra.mxu0 0.0
        %v1455 = vand.u32 %v1262, 4294901760
        %v1456 = vsub.f32 %v1262, %v1455
        %v1457 = vand.u32 %v1456, 4294901760
        %1458 = vmatpush.msra.mxu0 %v1457
        %v1459 = vand.u32 %v1261, 4294901760
        %v1460 = vsub.f32 %v1261, %v1459
        %v1461 = vand.u32 %v1460, 4294901760
        %1462 = vmatpush.msra.mxu0 %v1461
        %v1463 = vand.u32 %v204, 4294901760
        %1464 = vmatmul.f32.gmra.mxu0 %v1463
        %v1465 = vpop.f32.mrf.mxu0
        %v1466 = vadd.f32 %v1421, %v1465
        %v1467 = vand.u32 %v207, 4294901760
        %1468 = vmatmul.f32.gmra.mxu0 %v1467
        %v1469 = vpop.f32.mrf.mxu0
        %v1470 = vadd.f32 %v1427, %v1469
        %v1471 = vand.u32 %v210, 4294901760
        %1472 = vmatmul.f32.gmra.mxu0 %v1471
        %v1473 = vpop.f32.mrf.mxu0
        %v1474 = vadd.f32 %v1433, %v1473
        %v1475 = vand.u32 %v213, 4294901760
        %1476 = vmatmul.f32.gmra.mxu0 %v1475
        %v1477 = vpop.f32.mrf.mxu0
        %v1478 = vadd.f32 %v1439, %v1477
        %1479 = vdwg.mxu0
        %1480 = vmatpush.msra.mxu0 0.0
        %1481 = vmatpush.msra.mxu0 0.0
        %1482 = vmatpush.msra.mxu0 0.0
        %1483 = vmatpush.msra.mxu0 0.0
        %1484 = vmatpush.msra.mxu0 0.0
        %1485 = vmatpush.msra.mxu0 0.0
        %1486 = vmatpush.msra.mxu0 0.0
        %1487 = vmatpush.msra.mxu0 0.0
        %1488 = vmatpush.msra.mxu0 0.0
        %1489 = vmatpush.msra.mxu0 0.0
        %1490 = vmatpush.msra.mxu0 0.0
        %1491 = vmatpush.msra.mxu0 0.0
        %1492 = vmatpush.msra.mxu0 0.0
        %1493 = vmatpush.msra.mxu0 0.0
        %v1494 = vand.u32 %v1262, 4294901760
        %1495 = vmatpush.msra.mxu0 %v1494
        %v1496 = vand.u32 %v1261, 4294901760
        %1497 = vmatpush.msra.mxu0 %v1496
        %v1498 = vand.u32 %v204, 4294901760
        %1499 = vmatmul.f32.gmra.mxu0 %v1498
        %v1500 = vpop.f32.mrf.mxu0
        %v1501 = vadd.f32 %v1466, %v1500
        %v1502 = vand.u32 %v207, 4294901760
        %1503 = vmatmul.f32.gmra.mxu0 %v1502
        %v1504 = vpop.f32.mrf.mxu0
        %v1505 = vadd.f32 %v1470, %v1504
        %v1506 = vand.u32 %v210, 4294901760
        %1507 = vmatmul.f32.gmra.mxu0 %v1506
        %v1508 = vpop.f32.mrf.mxu0
        %v1509 = vadd.f32 %v1474, %v1508
        %v1510 = vand.u32 %v213, 4294901760
        %1511 = vmatmul.f32.gmra.mxu0 %v1510
        %v1512 = vpop.f32.mrf.mxu0
        %v1513 = vadd.f32 %v1478, %v1512
        %1514 = vdwg.mxu0
        %v1516 = vsel %vm202, %v1501, 0
        %v1519 = vsel %vm202, %v1505, 0
        %v1522 = vsel %vm202, %v1509, 0
        %v1525 = vsel %vm202, %v1513, 0
        %1527 = vmatpush.msra.mxu0 0.0
        %1528 = vmatpush.msra.mxu0 0.0
        %1529 = vmatpush.msra.mxu0 0.0
        %1530 = vmatpush.msra.mxu0 0.0
        %1531 = vmatpush.msra.mxu0 0.0
        %1532 = vmatpush.msra.mxu0 0.0
        %1533 = vmatpush.msra.mxu0 0.0
        %1534 = vmatpush.msra.mxu0 0.0
        %1535 = vmatpush.msra.mxu0 0.0
        %1536 = vmatpush.msra.mxu0 0.0
        %1537 = vmatpush.msra.mxu0 0.0
        %1538 = vmatpush.msra.mxu0 0.0
        %1539 = vmatpush.msra.mxu0 0.0
        %1540 = vmatpush.msra.mxu0 0.0
        %v1541 = vand.u32 %v199, 4294901760
        %1542 = vmatpush.msra.mxu0 %v1541
        %v1543 = vand.u32 %v198, 4294901760
        %1544 = vmatpush.msra.mxu0 %v1543
        %v1545 = vand.u32 %v1516, 4294901760
        %v1546 = vsub.f32 %v1516, %v1545
        %v1547 = vand.u32 %v1546, 4294901760
        %v1548 = vsub.f32 %v1546, %v1547
        %v1549 = vand.u32 %v1548, 4294901760
        %1550 = vmatmul.f32.gmra.mxu0 %v1549
        %v1551 = vpop.f32.mrf.mxu0
        %v1552 = vadd.f32 0.0, %v1551
        %v1553 = vand.u32 %v1519, 4294901760
        %v1554 = vsub.f32 %v1519, %v1553
        %v1555 = vand.u32 %v1554, 4294901760
        %v1556 = vsub.f32 %v1554, %v1555
        %v1557 = vand.u32 %v1556, 4294901760
        %1558 = vmatmul.f32.gmra.mxu0 %v1557
        %v1559 = vpop.f32.mrf.mxu0
        %v1560 = vadd.f32 0.0, %v1559
        %v1561 = vand.u32 %v1522, 4294901760
        %v1562 = vsub.f32 %v1522, %v1561
        %v1563 = vand.u32 %v1562, 4294901760
        %v1564 = vsub.f32 %v1562, %v1563
        %v1565 = vand.u32 %v1564, 4294901760
        %1566 = vmatmul.f32.gmra.mxu0 %v1565
        %v1567 = vpop.f32.mrf.mxu0
        %v1568 = vadd.f32 0.0, %v1567
        %v1569 = vand.u32 %v1525, 4294901760
        %v1570 = vsub.f32 %v1525, %v1569
        %v1571 = vand.u32 %v1570, 4294901760
        %v1572 = vsub.f32 %v1570, %v1571
        %v1573 = vand.u32 %v1572, 4294901760
        %1574 = vmatmul.f32.gmra.mxu0 %v1573
        %v1575 = vpop.f32.mrf.mxu0
        %v1576 = vadd.f32 0.0, %v1575
        %1577 = vdwg.mxu0
        %1578 = vmatpush.msra.mxu0 0.0
        %1579 = vmatpush.msra.mxu0 0.0
        %1580 = vmatpush.msra.mxu0 0.0
        %1581 = vmatpush.msra.mxu0 0.0
        %1582 = vmatpush.msra.mxu0 0.0
        %1583 = vmatpush.msra.mxu0 0.0
        %1584 = vmatpush.msra.mxu0 0.0
        %1585 = vmatpush.msra.mxu0 0.0
        %1586 = vmatpush.msra.mxu0 0.0
        %1587 = vmatpush.msra.mxu0 0.0
        %1588 = vmatpush.msra.mxu0 0.0
        %1589 = vmatpush.msra.mxu0 0.0
        %1590 = vmatpush.msra.mxu0 0.0
        %1591 = vmatpush.msra.mxu0 0.0
        %v1592 = vand.u32 %v199, 4294901760
        %v1593 = vsub.f32 %v199, %v1592
        %v1594 = vand.u32 %v1593, 4294901760
        %v1595 = vsub.f32 %v1593, %v1594
        %v1596 = vand.u32 %v1595, 4294901760
        %1597 = vmatpush.msra.mxu0 %v1596
        %v1598 = vand.u32 %v198, 4294901760
        %v1599 = vsub.f32 %v198, %v1598
        %v1600 = vand.u32 %v1599, 4294901760
        %v1601 = vsub.f32 %v1599, %v1600
        %v1602 = vand.u32 %v1601, 4294901760
        %1603 = vmatpush.msra.mxu0 %v1602
        %v1604 = vand.u32 %v1516, 4294901760
        %1605 = vmatmul.f32.gmra.mxu0 %v1604
        %v1606 = vpop.f32.mrf.mxu0
        %v1607 = vadd.f32 %v1552, %v1606
        %v1608 = vand.u32 %v1519, 4294901760
        %1609 = vmatmul.f32.gmra.mxu0 %v1608
        %v1610 = vpop.f32.mrf.mxu0
        %v1611 = vadd.f32 %v1560, %v1610
        %v1612 = vand.u32 %v1522, 4294901760
        %1613 = vmatmul.f32.gmra.mxu0 %v1612
        %v1614 = vpop.f32.mrf.mxu0
        %v1615 = vadd.f32 %v1568, %v1614
        %v1616 = vand.u32 %v1525, 4294901760
        %1617 = vmatmul.f32.gmra.mxu0 %v1616
        %v1618 = vpop.f32.mrf.mxu0
        %v1619 = vadd.f32 %v1576, %v1618
        %1620 = vdwg.mxu0
        %1621 = vmatpush.msra.mxu0 0.0
        %1622 = vmatpush.msra.mxu0 0.0
        %1623 = vmatpush.msra.mxu0 0.0
        %1624 = vmatpush.msra.mxu0 0.0
        %1625 = vmatpush.msra.mxu0 0.0
        %1626 = vmatpush.msra.mxu0 0.0
        %1627 = vmatpush.msra.mxu0 0.0
        %1628 = vmatpush.msra.mxu0 0.0
        %1629 = vmatpush.msra.mxu0 0.0
        %1630 = vmatpush.msra.mxu0 0.0
        %1631 = vmatpush.msra.mxu0 0.0
        %1632 = vmatpush.msra.mxu0 0.0
        %1633 = vmatpush.msra.mxu0 0.0
        %1634 = vmatpush.msra.mxu0 0.0
        %v1635 = vand.u32 %v199, 4294901760
        %v1636 = vsub.f32 %v199, %v1635
        %1637 = vmatpush.msra.mxu0 %v1636
        %v1638 = vand.u32 %v198, 4294901760
        %v1639 = vsub.f32 %v198, %v1638
        %1640 = vmatpush.msra.mxu0 %v1639
        %v1641 = vand.u32 %v1516, 4294901760
        %v1642 = vsub.f32 %v1516, %v1641
        %1643 = vmatmul.f32.gmra.mxu0 %v1642
        %v1644 = vpop.f32.mrf.mxu0
        %v1645 = vadd.f32 %v1607, %v1644
        %v1646 = vand.u32 %v1519, 4294901760
        %v1647 = vsub.f32 %v1519, %v1646
        %1648 = vmatmul.f32.gmra.mxu0 %v1647
        %v1649 = vpop.f32.mrf.mxu0
        %v1650 = vadd.f32 %v1611, %v1649
        %v1651 = vand.u32 %v1522, 4294901760
        %v1652 = vsub.f32 %v1522, %v1651
        %1653 = vmatmul.f32.gmra.mxu0 %v1652
        %v1654 = vpop.f32.mrf.mxu0
        %v1655 = vadd.f32 %v1615, %v1654
        %v1656 = vand.u32 %v1525, 4294901760
        %v1657 = vsub.f32 %v1525, %v1656
        %1658 = vmatmul.f32.gmra.mxu0 %v1657
        %v1659 = vpop.f32.mrf.mxu0
        %v1660 = vadd.f32 %v1619, %v1659
        %1661 = vdwg.mxu0
        %1662 = vmatpush.msra.mxu0 0.0
        %1663 = vmatpush.msra.mxu0 0.0
        %1664 = vmatpush.msra.mxu0 0.0
        %1665 = vmatpush.msra.mxu0 0.0
        %1666 = vmatpush.msra.mxu0 0.0
        %1667 = vmatpush.msra.mxu0 0.0
        %1668 = vmatpush.msra.mxu0 0.0
        %1669 = vmatpush.msra.mxu0 0.0
        %1670 = vmatpush.msra.mxu0 0.0
        %1671 = vmatpush.msra.mxu0 0.0
        %1672 = vmatpush.msra.mxu0 0.0
        %1673 = vmatpush.msra.mxu0 0.0
        %1674 = vmatpush.msra.mxu0 0.0
        %1675 = vmatpush.msra.mxu0 0.0
        %v1676 = vand.u32 %v199, 4294901760
        %1677 = vmatpush.msra.mxu0 %v1676
        %v1678 = vand.u32 %v198, 4294901760
        %1679 = vmatpush.msra.mxu0 %v1678
        %v1680 = vand.u32 %v1516, 4294901760
        %v1681 = vsub.f32 %v1516, %v1680
        %v1682 = vand.u32 %v1681, 4294901760
        %1683 = vmatmul.f32.gmra.mxu0 %v1682
        %v1684 = vpop.f32.mrf.mxu0
        %v1685 = vadd.f32 %v1645, %v1684
        %v1686 = vand.u32 %v1519, 4294901760
        %v1687 = vsub.f32 %v1519, %v1686
        %v1688 = vand.u32 %v1687, 4294901760
        %1689 = vmatmul.f32.gmra.mxu0 %v1688
        %v1690 = vpop.f32.mrf.mxu0
        %v1691 = vadd.f32 %v1650, %v1690
        %v1692 = vand.u32 %v1522, 4294901760
        %v1693 = vsub.f32 %v1522, %v1692
        %v1694 = vand.u32 %v1693, 4294901760
        %1695 = vmatmul.f32.gmra.mxu0 %v1694
        %v1696 = vpop.f32.mrf.mxu0
        %v1697 = vadd.f32 %v1655, %v1696
        %v1698 = vand.u32 %v1525, 4294901760
        %v1699 = vsub.f32 %v1525, %v1698
        %v1700 = vand.u32 %v1699, 4294901760
        %1701 = vmatmul.f32.gmra.mxu0 %v1700
        %v1702 = vpop.f32.mrf.mxu0
        %v1703 = vadd.f32 %v1660, %v1702
        %1704 = vdwg.mxu0
        %1705 = vmatpush.msra.mxu0 0.0
        %1706 = vmatpush.msra.mxu0 0.0
        %1707 = vmatpush.msra.mxu0 0.0
        %1708 = vmatpush.msra.mxu0 0.0
        %1709 = vmatpush.msra.mxu0 0.0
        %1710 = vmatpush.msra.mxu0 0.0
        %1711 = vmatpush.msra.mxu0 0.0
        %1712 = vmatpush.msra.mxu0 0.0
        %1713 = vmatpush.msra.mxu0 0.0
        %1714 = vmatpush.msra.mxu0 0.0
        %1715 = vmatpush.msra.mxu0 0.0
        %1716 = vmatpush.msra.mxu0 0.0
        %1717 = vmatpush.msra.mxu0 0.0
        %1718 = vmatpush.msra.mxu0 0.0
        %v1719 = vand.u32 %v199, 4294901760
        %v1720 = vsub.f32 %v199, %v1719
        %v1721 = vand.u32 %v1720, 4294901760
        %1722 = vmatpush.msra.mxu0 %v1721
        %v1723 = vand.u32 %v198, 4294901760
        %v1724 = vsub.f32 %v198, %v1723
        %v1725 = vand.u32 %v1724, 4294901760
        %1726 = vmatpush.msra.mxu0 %v1725
        %v1727 = vand.u32 %v1516, 4294901760
        %1728 = vmatmul.f32.gmra.mxu0 %v1727
        %v1729 = vpop.f32.mrf.mxu0
        %v1730 = vadd.f32 %v1685, %v1729
        %v1731 = vand.u32 %v1519, 4294901760
        %1732 = vmatmul.f32.gmra.mxu0 %v1731
        %v1733 = vpop.f32.mrf.mxu0
        %v1734 = vadd.f32 %v1691, %v1733
        %v1735 = vand.u32 %v1522, 4294901760
        %1736 = vmatmul.f32.gmra.mxu0 %v1735
        %v1737 = vpop.f32.mrf.mxu0
        %v1738 = vadd.f32 %v1697, %v1737
        %v1739 = vand.u32 %v1525, 4294901760
        %1740 = vmatmul.f32.gmra.mxu0 %v1739
        %v1741 = vpop.f32.mrf.mxu0
        %v1742 = vadd.f32 %v1703, %v1741
        %1743 = vdwg.mxu0
        %1744 = vmatpush.msra.mxu0 0.0
        %1745 = vmatpush.msra.mxu0 0.0
        %1746 = vmatpush.msra.mxu0 0.0
        %1747 = vmatpush.msra.mxu0 0.0
        %1748 = vmatpush.msra.mxu0 0.0
        %1749 = vmatpush.msra.mxu0 0.0
        %1750 = vmatpush.msra.mxu0 0.0
        %1751 = vmatpush.msra.mxu0 0.0
        %1752 = vmatpush.msra.mxu0 0.0
        %1753 = vmatpush.msra.mxu0 0.0
        %1754 = vmatpush.msra.mxu0 0.0
        %1755 = vmatpush.msra.mxu0 0.0
        %1756 = vmatpush.msra.mxu0 0.0
        %1757 = vmatpush.msra.mxu0 0.0
        %v1758 = vand.u32 %v199, 4294901760
        %1759 = vmatpush.msra.mxu0 %v1758
        %v1760 = vand.u32 %v198, 4294901760
        %1761 = vmatpush.msra.mxu0 %v1760
        %v1762 = vand.u32 %v1516, 4294901760
        %1763 = vmatmul.f32.gmra.mxu0 %v1762
        %v1764 = vpop.f32.mrf.mxu0
        %v1765 = vadd.f32 %v1730, %v1764
        %v1766 = vand.u32 %v1519, 4294901760
        %1767 = vmatmul.f32.gmra.mxu0 %v1766
        %v1768 = vpop.f32.mrf.mxu0
        %v1769 = vadd.f32 %v1734, %v1768
        %v1770 = vand.u32 %v1522, 4294901760
        %1771 = vmatmul.f32.gmra.mxu0 %v1770
        %v1772 = vpop.f32.mrf.mxu0
        %v1773 = vadd.f32 %v1738, %v1772
        %v1774 = vand.u32 %v1525, 4294901760
        %1775 = vmatmul.f32.gmra.mxu0 %v1774
        %v1776 = vpop.f32.mrf.mxu0
        %v1777 = vadd.f32 %v1742, %v1776
        %1778 = vdwg.mxu0
        %s1779 = scalar_lea.vmem %s191, 64 [#allocation5]
        %1780 = vst.msk [vmem:[%s1779] sm:$0xff] %vm731, %v1765
        %1781 = vst.msk [vmem:[%s1779 + $0x8] sm:$0xff] %vm731, %v1769
        %1782 = vst.msk [vmem:[%s1779 + $0x10] sm:$0xff] %vm731, %v1773
        %1783 = vst.msk [vmem:[%s1779 + $0x18] sm:$0xff] %vm731, %v1777
        %s1784 = scalar_lea.vmem %s168, 48 [#allocation2]
        %v1785 = vld [vmem:[%s1784] sm:$0xff]
        %v1786 = vld [vmem:[%s1784 + $0x8] sm:$0xff]
        %1787 = vmatpush.msra.mxu0 0.0
        %1788 = vmatpush.msra.mxu0 0.0
        %1789 = vmatpush.msra.mxu0 0.0
        %1790 = vmatpush.msra.mxu0 0.0
        %1791 = vmatpush.msra.mxu0 0.0
        %1792 = vmatpush.msra.mxu0 0.0
        %1793 = vmatpush.msra.mxu0 0.0
        %1794 = vmatpush.msra.mxu0 0.0
        %1795 = vmatpush.msra.mxu0 0.0
        %1796 = vmatpush.msra.mxu0 0.0
        %1797 = vmatpush.msra.mxu0 0.0
        %1798 = vmatpush.msra.mxu0 0.0
        %1799 = vmatpush.msra.mxu0 0.0
        %1800 = vmatpush.msra.mxu0 0.0
        %v1801 = vand.u32 %v1786, 4294901760
        %1802 = vmatpush.msra.mxu0 %v1801
        %v1803 = vand.u32 %v1785, 4294901760
        %1804 = vmatpush.msra.mxu0 %v1803
        %v1805 = vand.u32 %v204, 4294901760
        %v1806 = vsub.f32 %v204, %v1805
        %v1807 = vand.u32 %v1806, 4294901760
        %v1808 = vsub.f32 %v1806, %v1807
        %v1809 = vand.u32 %v1808, 4294901760
        %1810 = vmatmul.f32.gmra.mxu0 %v1809
        %v1811 = vpop.f32.mrf.mxu0
        %v1812 = vadd.f32 0.0, %v1811
        %v1813 = vand.u32 %v207, 4294901760
        %v1814 = vsub.f32 %v207, %v1813
        %v1815 = vand.u32 %v1814, 4294901760
        %v1816 = vsub.f32 %v1814, %v1815
        %v1817 = vand.u32 %v1816, 4294901760
        %1818 = vmatmul.f32.gmra.mxu0 %v1817
        %v1819 = vpop.f32.mrf.mxu0
        %v1820 = vadd.f32 0.0, %v1819
        %v1821 = vand.u32 %v210, 4294901760
        %v1822 = vsub.f32 %v210, %v1821
        %v1823 = vand.u32 %v1822, 4294901760
        %v1824 = vsub.f32 %v1822, %v1823
        %v1825 = vand.u32 %v1824, 4294901760
        %1826 = vmatmul.f32.gmra.mxu0 %v1825
        %v1827 = vpop.f32.mrf.mxu0
        %v1828 = vadd.f32 0.0, %v1827
        %v1829 = vand.u32 %v213, 4294901760
        %v1830 = vsub.f32 %v213, %v1829
        %v1831 = vand.u32 %v1830, 4294901760
        %v1832 = vsub.f32 %v1830, %v1831
        %v1833 = vand.u32 %v1832, 4294901760
        %1834 = vmatmul.f32.gmra.mxu0 %v1833
        %v1835 = vpop.f32.mrf.mxu0
        %v1836 = vadd.f32 0.0, %v1835
        %1837 = vdwg.mxu0
        %1838 = vmatpush.msra.mxu0 0.0
        %1839 = vmatpush.msra.mxu0 0.0
        %1840 = vmatpush.msra.mxu0 0.0
        %1841 = vmatpush.msra.mxu0 0.0
        %1842 = vmatpush.msra.mxu0 0.0
        %1843 = vmatpush.msra.mxu0 0.0
        %1844 = vmatpush.msra.mxu0 0.0
        %1845 = vmatpush.msra.mxu0 0.0
        %1846 = vmatpush.msra.mxu0 0.0
        %1847 = vmatpush.msra.mxu0 0.0
        %1848 = vmatpush.msra.mxu0 0.0
        %1849 = vmatpush.msra.mxu0 0.0
        %1850 = vmatpush.msra.mxu0 0.0
        %1851 = vmatpush.msra.mxu0 0.0
        %v1852 = vand.u32 %v1786, 4294901760
        %v1853 = vsub.f32 %v1786, %v1852
        %v1854 = vand.u32 %v1853, 4294901760
        %v1855 = vsub.f32 %v1853, %v1854
        %v1856 = vand.u32 %v1855, 4294901760
        %1857 = vmatpush.msra.mxu0 %v1856
        %v1858 = vand.u32 %v1785, 4294901760
        %v1859 = vsub.f32 %v1785, %v1858
        %v1860 = vand.u32 %v1859, 4294901760
        %v1861 = vsub.f32 %v1859, %v1860
        %v1862 = vand.u32 %v1861, 4294901760
        %1863 = vmatpush.msra.mxu0 %v1862
        %v1864 = vand.u32 %v204, 4294901760
        %1865 = vmatmul.f32.gmra.mxu0 %v1864
        %v1866 = vpop.f32.mrf.mxu0
        %v1867 = vadd.f32 %v1812, %v1866
        %v1868 = vand.u32 %v207, 4294901760
        %1869 = vmatmul.f32.gmra.mxu0 %v1868
        %v1870 = vpop.f32.mrf.mxu0
        %v1871 = vadd.f32 %v1820, %v1870
        %v1872 = vand.u32 %v210, 4294901760
        %1873 = vmatmul.f32.gmra.mxu0 %v1872
        %v1874 = vpop.f32.mrf.mxu0
        %v1875 = vadd.f32 %v1828, %v1874
        %v1876 = vand.u32 %v213, 4294901760
        %1877 = vmatmul.f32.gmra.mxu0 %v1876
        %v1878 = vpop.f32.mrf.mxu0
        %v1879 = vadd.f32 %v1836, %v1878
        %1880 = vdwg.mxu0
        %1881 = vmatpush.msra.mxu0 0.0
        %1882 = vmatpush.msra.mxu0 0.0
        %1883 = vmatpush.msra.mxu0 0.0
        %1884 = vmatpush.msra.mxu0 0.0
        %1885 = vmatpush.msra.mxu0 0.0
        %1886 = vmatpush.msra.mxu0 0.0
        %1887 = vmatpush.msra.mxu0 0.0
        %1888 = vmatpush.msra.mxu0 0.0
        %1889 = vmatpush.msra.mxu0 0.0
        %1890 = vmatpush.msra.mxu0 0.0
        %1891 = vmatpush.msra.mxu0 0.0
        %1892 = vmatpush.msra.mxu0 0.0
        %1893 = vmatpush.msra.mxu0 0.0
        %1894 = vmatpush.msra.mxu0 0.0
        %v1895 = vand.u32 %v1786, 4294901760
        %v1896 = vsub.f32 %v1786, %v1895
        %1897 = vmatpush.msra.mxu0 %v1896
        %v1898 = vand.u32 %v1785, 4294901760
        %v1899 = vsub.f32 %v1785, %v1898
        %1900 = vmatpush.msra.mxu0 %v1899
        %v1901 = vand.u32 %v204, 4294901760
        %v1902 = vsub.f32 %v204, %v1901
        %1903 = vmatmul.f32.gmra.mxu0 %v1902
        %v1904 = vpop.f32.mrf.mxu0
        %v1905 = vadd.f32 %v1867, %v1904
        %v1906 = vand.u32 %v207, 4294901760
        %v1907 = vsub.f32 %v207, %v1906
        %1908 = vmatmul.f32.gmra.mxu0 %v1907
        %v1909 = vpop.f32.mrf.mxu0
        %v1910 = vadd.f32 %v1871, %v1909
        %v1911 = vand.u32 %v210, 4294901760
        %v1912 = vsub.f32 %v210, %v1911
        %1913 = vmatmul.f32.gmra.mxu0 %v1912
        %v1914 = vpop.f32.mrf.mxu0
        %v1915 = vadd.f32 %v1875, %v1914
        %v1916 = vand.u32 %v213, 4294901760
        %v1917 = vsub.f32 %v213, %v1916
        %1918 = vmatmul.f32.gmra.mxu0 %v1917
        %v1919 = vpop.f32.mrf.mxu0
        %v1920 = vadd.f32 %v1879, %v1919
        %1921 = vdwg.mxu0
        %1922 = vmatpush.msra.mxu0 0.0
        %1923 = vmatpush.msra.mxu0 0.0
        %1924 = vmatpush.msra.mxu0 0.0
        %1925 = vmatpush.msra.mxu0 0.0
        %1926 = vmatpush.msra.mxu0 0.0
        %1927 = vmatpush.msra.mxu0 0.0
        %1928 = vmatpush.msra.mxu0 0.0
        %1929 = vmatpush.msra.mxu0 0.0
        %1930 = vmatpush.msra.mxu0 0.0
        %1931 = vmatpush.msra.mxu0 0.0
        %1932 = vmatpush.msra.mxu0 0.0
        %1933 = vmatpush.msra.mxu0 0.0
        %1934 = vmatpush.msra.mxu0 0.0
        %1935 = vmatpush.msra.mxu0 0.0
        %v1936 = vand.u32 %v1786, 4294901760
        %1937 = vmatpush.msra.mxu0 %v1936
        %v1938 = vand.u32 %v1785, 4294901760
        %1939 = vmatpush.msra.mxu0 %v1938
        %v1940 = vand.u32 %v204, 4294901760
        %v1941 = vsub.f32 %v204, %v1940
        %v1942 = vand.u32 %v1941, 4294901760
        %1943 = vmatmul.f32.gmra.mxu0 %v1942
        %v1944 = vpop.f32.mrf.mxu0
        %v1945 = vadd.f32 %v1905, %v1944
        %v1946 = vand.u32 %v207, 4294901760
        %v1947 = vsub.f32 %v207, %v1946
        %v1948 = vand.u32 %v1947, 4294901760
        %1949 = vmatmul.f32.gmra.mxu0 %v1948
        %v1950 = vpop.f32.mrf.mxu0
        %v1951 = vadd.f32 %v1910, %v1950
        %v1952 = vand.u32 %v210, 4294901760
        %v1953 = vsub.f32 %v210, %v1952
        %v1954 = vand.u32 %v1953, 4294901760
        %1955 = vmatmul.f32.gmra.mxu0 %v1954
        %v1956 = vpop.f32.mrf.mxu0
        %v1957 = vadd.f32 %v1915, %v1956
        %v1958 = vand.u32 %v213, 4294901760
        %v1959 = vsub.f32 %v213, %v1958
        %v1960 = vand.u32 %v1959, 4294901760
        %1961 = vmatmul.f32.gmra.mxu0 %v1960
        %v1962 = vpop.f32.mrf.mxu0
        %v1963 = vadd.f32 %v1920, %v1962
        %1964 = vdwg.mxu0
        %1965 = vmatpush.msra.mxu0 0.0
        %1966 = vmatpush.msra.mxu0 0.0
        %1967 = vmatpush.msra.mxu0 0.0
        %1968 = vmatpush.msra.mxu0 0.0
        %1969 = vmatpush.msra.mxu0 0.0
        %1970 = vmatpush.msra.mxu0 0.0
        %1971 = vmatpush.msra.mxu0 0.0
        %1972 = vmatpush.msra.mxu0 0.0
        %1973 = vmatpush.msra.mxu0 0.0
        %1974 = vmatpush.msra.mxu0 0.0
        %1975 = vmatpush.msra.mxu0 0.0
        %1976 = vmatpush.msra.mxu0 0.0
        %1977 = vmatpush.msra.mxu0 0.0
        %1978 = vmatpush.msra.mxu0 0.0
        %v1979 = vand.u32 %v1786, 4294901760
        %v1980 = vsub.f32 %v1786, %v1979
        %v1981 = vand.u32 %v1980, 4294901760
        %1982 = vmatpush.msra.mxu0 %v1981
        %v1983 = vand.u32 %v1785, 4294901760
        %v1984 = vsub.f32 %v1785, %v1983
        %v1985 = vand.u32 %v1984, 4294901760
        %1986 = vmatpush.msra.mxu0 %v1985
        %v1987 = vand.u32 %v204, 4294901760
        %1988 = vmatmul.f32.gmra.mxu0 %v1987
        %v1989 = vpop.f32.mrf.mxu0
        %v1990 = vadd.f32 %v1945, %v1989
        %v1991 = vand.u32 %v207, 4294901760
        %1992 = vmatmul.f32.gmra.mxu0 %v1991
        %v1993 = vpop.f32.mrf.mxu0
        %v1994 = vadd.f32 %v1951, %v1993
        %v1995 = vand.u32 %v210, 4294901760
        %1996 = vmatmul.f32.gmra.mxu0 %v1995
        %v1997 = vpop.f32.mrf.mxu0
        %v1998 = vadd.f32 %v1957, %v1997
        %v1999 = vand.u32 %v213, 4294901760
        %2000 = vmatmul.f32.gmra.mxu0 %v1999
        %v2001 = vpop.f32.mrf.mxu0
        %v2002 = vadd.f32 %v1963, %v2001
        %2003 = vdwg.mxu0
        %2004 = vmatpush.msra.mxu0 0.0
        %2005 = vmatpush.msra.mxu0 0.0
        %2006 = vmatpush.msra.mxu0 0.0
        %2007 = vmatpush.msra.mxu0 0.0
        %2008 = vmatpush.msra.mxu0 0.0
        %2009 = vmatpush.msra.mxu0 0.0
        %2010 = vmatpush.msra.mxu0 0.0
        %2011 = vmatpush.msra.mxu0 0.0
        %2012 = vmatpush.msra.mxu0 0.0
        %2013 = vmatpush.msra.mxu0 0.0
        %2014 = vmatpush.msra.mxu0 0.0
        %2015 = vmatpush.msra.mxu0 0.0
        %2016 = vmatpush.msra.mxu0 0.0
        %2017 = vmatpush.msra.mxu0 0.0
        %v2018 = vand.u32 %v1786, 4294901760
        %2019 = vmatpush.msra.mxu0 %v2018
        %v2020 = vand.u32 %v1785, 4294901760
        %2021 = vmatpush.msra.mxu0 %v2020
        %v2022 = vand.u32 %v204, 4294901760
        %2023 = vmatmul.f32.gmra.mxu0 %v2022
        %v2024 = vpop.f32.mrf.mxu0
        %v2025 = vadd.f32 %v1990, %v2024
        %v2026 = vand.u32 %v207, 4294901760
        %2027 = vmatmul.f32.gmra.mxu0 %v2026
        %v2028 = vpop.f32.mrf.mxu0
        %v2029 = vadd.f32 %v1994, %v2028
        %v2030 = vand.u32 %v210, 4294901760
        %2031 = vmatmul.f32.gmra.mxu0 %v2030
        %v2032 = vpop.f32.mrf.mxu0
        %v2033 = vadd.f32 %v1998, %v2032
        %v2034 = vand.u32 %v213, 4294901760
        %2035 = vmatmul.f32.gmra.mxu0 %v2034
        %v2036 = vpop.f32.mrf.mxu0
        %v2037 = vadd.f32 %v2002, %v2036
        %2038 = vdwg.mxu0
        %v2040 = vsel %vm202, %v2025, 0
        %v2043 = vsel %vm202, %v2029, 0
        %v2046 = vsel %vm202, %v2033, 0
        %v2049 = vsel %vm202, %v2037, 0
        %2051 = vmatpush.msra.mxu0 0.0
        %2052 = vmatpush.msra.mxu0 0.0
        %2053 = vmatpush.msra.mxu0 0.0
        %2054 = vmatpush.msra.mxu0 0.0
        %2055 = vmatpush.msra.mxu0 0.0
        %2056 = vmatpush.msra.mxu0 0.0
        %2057 = vmatpush.msra.mxu0 0.0
        %2058 = vmatpush.msra.mxu0 0.0
        %2059 = vmatpush.msra.mxu0 0.0
        %2060 = vmatpush.msra.mxu0 0.0
        %2061 = vmatpush.msra.mxu0 0.0
        %2062 = vmatpush.msra.mxu0 0.0
        %2063 = vmatpush.msra.mxu0 0.0
        %2064 = vmatpush.msra.mxu0 0.0
        %v2065 = vand.u32 %v199, 4294901760
        %2066 = vmatpush.msra.mxu0 %v2065
        %v2067 = vand.u32 %v198, 4294901760
        %2068 = vmatpush.msra.mxu0 %v2067
        %v2069 = vand.u32 %v2040, 4294901760
        %v2070 = vsub.f32 %v2040, %v2069
        %v2071 = vand.u32 %v2070, 4294901760
        %v2072 = vsub.f32 %v2070, %v2071
        %v2073 = vand.u32 %v2072, 4294901760
        %2074 = vmatmul.f32.gmra.mxu0 %v2073
        %v2075 = vpop.f32.mrf.mxu0
        %v2076 = vadd.f32 0.0, %v2075
        %v2077 = vand.u32 %v2043, 4294901760
        %v2078 = vsub.f32 %v2043, %v2077
        %v2079 = vand.u32 %v2078, 4294901760
        %v2080 = vsub.f32 %v2078, %v2079
        %v2081 = vand.u32 %v2080, 4294901760
        %2082 = vmatmul.f32.gmra.mxu0 %v2081
        %v2083 = vpop.f32.mrf.mxu0
        %v2084 = vadd.f32 0.0, %v2083
        %v2085 = vand.u32 %v2046, 4294901760
        %v2086 = vsub.f32 %v2046, %v2085
        %v2087 = vand.u32 %v2086, 4294901760
        %v2088 = vsub.f32 %v2086, %v2087
        %v2089 = vand.u32 %v2088, 4294901760
        %2090 = vmatmul.f32.gmra.mxu0 %v2089
        %v2091 = vpop.f32.mrf.mxu0
        %v2092 = vadd.f32 0.0, %v2091
        %v2093 = vand.u32 %v2049, 4294901760
        %v2094 = vsub.f32 %v2049, %v2093
        %v2095 = vand.u32 %v2094, 4294901760
        %v2096 = vsub.f32 %v2094, %v2095
        %v2097 = vand.u32 %v2096, 4294901760
        %2098 = vmatmul.f32.gmra.mxu0 %v2097
        %v2099 = vpop.f32.mrf.mxu0
        %v2100 = vadd.f32 0.0, %v2099
        %2101 = vdwg.mxu0
        %2102 = vmatpush.msra.mxu0 0.0
        %2103 = vmatpush.msra.mxu0 0.0
        %2104 = vmatpush.msra.mxu0 0.0
        %2105 = vmatpush.msra.mxu0 0.0
        %2106 = vmatpush.msra.mxu0 0.0
        %2107 = vmatpush.msra.mxu0 0.0
        %2108 = vmatpush.msra.mxu0 0.0
        %2109 = vmatpush.msra.mxu0 0.0
        %2110 = vmatpush.msra.mxu0 0.0
        %2111 = vmatpush.msra.mxu0 0.0
        %2112 = vmatpush.msra.mxu0 0.0
        %2113 = vmatpush.msra.mxu0 0.0
        %2114 = vmatpush.msra.mxu0 0.0
        %2115 = vmatpush.msra.mxu0 0.0
        %v2116 = vand.u32 %v199, 4294901760
        %v2117 = vsub.f32 %v199, %v2116
        %v2118 = vand.u32 %v2117, 4294901760
        %v2119 = vsub.f32 %v2117, %v2118
        %v2120 = vand.u32 %v2119, 4294901760
        %2121 = vmatpush.msra.mxu0 %v2120
        %v2122 = vand.u32 %v198, 4294901760
        %v2123 = vsub.f32 %v198, %v2122
        %v2124 = vand.u32 %v2123, 4294901760
        %v2125 = vsub.f32 %v2123, %v2124
        %v2126 = vand.u32 %v2125, 4294901760
        %2127 = vmatpush.msra.mxu0 %v2126
        %v2128 = vand.u32 %v2040, 4294901760
        %2129 = vmatmul.f32.gmra.mxu0 %v2128
        %v2130 = vpop.f32.mrf.mxu0
        %v2131 = vadd.f32 %v2076, %v2130
        %v2132 = vand.u32 %v2043, 4294901760
        %2133 = vmatmul.f32.gmra.mxu0 %v2132
        %v2134 = vpop.f32.mrf.mxu0
        %v2135 = vadd.f32 %v2084, %v2134
        %v2136 = vand.u32 %v2046, 4294901760
        %2137 = vmatmul.f32.gmra.mxu0 %v2136
        %v2138 = vpop.f32.mrf.mxu0
        %v2139 = vadd.f32 %v2092, %v2138
        %v2140 = vand.u32 %v2049, 4294901760
        %2141 = vmatmul.f32.gmra.mxu0 %v2140
        %v2142 = vpop.f32.mrf.mxu0
        %v2143 = vadd.f32 %v2100, %v2142
        %2144 = vdwg.mxu0
        %2145 = vmatpush.msra.mxu0 0.0
        %2146 = vmatpush.msra.mxu0 0.0
        %2147 = vmatpush.msra.mxu0 0.0
        %2148 = vmatpush.msra.mxu0 0.0
        %2149 = vmatpush.msra.mxu0 0.0
        %2150 = vmatpush.msra.mxu0 0.0
        %2151 = vmatpush.msra.mxu0 0.0
        %2152 = vmatpush.msra.mxu0 0.0
        %2153 = vmatpush.msra.mxu0 0.0
        %2154 = vmatpush.msra.mxu0 0.0
        %2155 = vmatpush.msra.mxu0 0.0
        %2156 = vmatpush.msra.mxu0 0.0
        %2157 = vmatpush.msra.mxu0 0.0
        %2158 = vmatpush.msra.mxu0 0.0
        %v2159 = vand.u32 %v199, 4294901760
        %v2160 = vsub.f32 %v199, %v2159
        %2161 = vmatpush.msra.mxu0 %v2160
        %v2162 = vand.u32 %v198, 4294901760
        %v2163 = vsub.f32 %v198, %v2162
        %2164 = vmatpush.msra.mxu0 %v2163
        %v2165 = vand.u32 %v2040, 4294901760
        %v2166 = vsub.f32 %v2040, %v2165
        %2167 = vmatmul.f32.gmra.mxu0 %v2166
        %v2168 = vpop.f32.mrf.mxu0
        %v2169 = vadd.f32 %v2131, %v2168
        %v2170 = vand.u32 %v2043, 4294901760
        %v2171 = vsub.f32 %v2043, %v2170
        %2172 = vmatmul.f32.gmra.mxu0 %v2171
        %v2173 = vpop.f32.mrf.mxu0
        %v2174 = vadd.f32 %v2135, %v2173
        %v2175 = vand.u32 %v2046, 4294901760
        %v2176 = vsub.f32 %v2046, %v2175
        %2177 = vmatmul.f32.gmra.mxu0 %v2176
        %v2178 = vpop.f32.mrf.mxu0
        %v2179 = vadd.f32 %v2139, %v2178
        %v2180 = vand.u32 %v2049, 4294901760
        %v2181 = vsub.f32 %v2049, %v2180
        %2182 = vmatmul.f32.gmra.mxu0 %v2181
        %v2183 = vpop.f32.mrf.mxu0
        %v2184 = vadd.f32 %v2143, %v2183
        %2185 = vdwg.mxu0
        %2186 = vmatpush.msra.mxu0 0.0
        %2187 = vmatpush.msra.mxu0 0.0
        %2188 = vmatpush.msra.mxu0 0.0
        %2189 = vmatpush.msra.mxu0 0.0
        %2190 = vmatpush.msra.mxu0 0.0
        %2191 = vmatpush.msra.mxu0 0.0
        %2192 = vmatpush.msra.mxu0 0.0
        %2193 = vmatpush.msra.mxu0 0.0
        %2194 = vmatpush.msra.mxu0 0.0
        %2195 = vmatpush.msra.mxu0 0.0
        %2196 = vmatpush.msra.mxu0 0.0
        %2197 = vmatpush.msra.mxu0 0.0
        %2198 = vmatpush.msra.mxu0 0.0
        %2199 = vmatpush.msra.mxu0 0.0
        %v2200 = vand.u32 %v199, 4294901760
        %2201 = vmatpush.msra.mxu0 %v2200
        %v2202 = vand.u32 %v198, 4294901760
        %2203 = vmatpush.msra.mxu0 %v2202
        %v2204 = vand.u32 %v2040, 4294901760
        %v2205 = vsub.f32 %v2040, %v2204
        %v2206 = vand.u32 %v2205, 4294901760
        %2207 = vmatmul.f32.gmra.mxu0 %v2206
        %v2208 = vpop.f32.mrf.mxu0
        %v2209 = vadd.f32 %v2169, %v2208
        %v2210 = vand.u32 %v2043, 4294901760
        %v2211 = vsub.f32 %v2043, %v2210
        %v2212 = vand.u32 %v2211, 4294901760
        %2213 = vmatmul.f32.gmra.mxu0 %v2212
        %v2214 = vpop.f32.mrf.mxu0
        %v2215 = vadd.f32 %v2174, %v2214
        %v2216 = vand.u32 %v2046, 4294901760
        %v2217 = vsub.f32 %v2046, %v2216
        %v2218 = vand.u32 %v2217, 4294901760
        %2219 = vmatmul.f32.gmra.mxu0 %v2218
        %v2220 = vpop.f32.mrf.mxu0
        %v2221 = vadd.f32 %v2179, %v2220
        %v2222 = vand.u32 %v2049, 4294901760
        %v2223 = vsub.f32 %v2049, %v2222
        %v2224 = vand.u32 %v2223, 4294901760
        %2225 = vmatmul.f32.gmra.mxu0 %v2224
        %v2226 = vpop.f32.mrf.mxu0
        %v2227 = vadd.f32 %v2184, %v2226
        %2228 = vdwg.mxu0
        %2229 = vmatpush.msra.mxu0 0.0
        %2230 = vmatpush.msra.mxu0 0.0
        %2231 = vmatpush.msra.mxu0 0.0
        %2232 = vmatpush.msra.mxu0 0.0
        %2233 = vmatpush.msra.mxu0 0.0
        %2234 = vmatpush.msra.mxu0 0.0
        %2235 = vmatpush.msra.mxu0 0.0
        %2236 = vmatpush.msra.mxu0 0.0
        %2237 = vmatpush.msra.mxu0 0.0
        %2238 = vmatpush.msra.mxu0 0.0
        %2239 = vmatpush.msra.mxu0 0.0
        %2240 = vmatpush.msra.mxu0 0.0
        %2241 = vmatpush.msra.mxu0 0.0
        %2242 = vmatpush.msra.mxu0 0.0
        %v2243 = vand.u32 %v199, 4294901760
        %v2244 = vsub.f32 %v199, %v2243
        %v2245 = vand.u32 %v2244, 4294901760
        %2246 = vmatpush.msra.mxu0 %v2245
        %v2247 = vand.u32 %v198, 4294901760
        %v2248 = vsub.f32 %v198, %v2247
        %v2249 = vand.u32 %v2248, 4294901760
        %2250 = vmatpush.msra.mxu0 %v2249
        %v2251 = vand.u32 %v2040, 4294901760
        %2252 = vmatmul.f32.gmra.mxu0 %v2251
        %v2253 = vpop.f32.mrf.mxu0
        %v2254 = vadd.f32 %v2209, %v2253
        %v2255 = vand.u32 %v2043, 4294901760
        %2256 = vmatmul.f32.gmra.mxu0 %v2255
        %v2257 = vpop.f32.mrf.mxu0
        %v2258 = vadd.f32 %v2215, %v2257
        %v2259 = vand.u32 %v2046, 4294901760
        %2260 = vmatmul.f32.gmra.mxu0 %v2259
        %v2261 = vpop.f32.mrf.mxu0
        %v2262 = vadd.f32 %v2221, %v2261
        %v2263 = vand.u32 %v2049, 4294901760
        %2264 = vmatmul.f32.gmra.mxu0 %v2263
        %v2265 = vpop.f32.mrf.mxu0
        %v2266 = vadd.f32 %v2227, %v2265
        %2267 = vdwg.mxu0
        %2268 = vmatpush.msra.mxu0 0.0
        %2269 = vmatpush.msra.mxu0 0.0
        %2270 = vmatpush.msra.mxu0 0.0
        %2271 = vmatpush.msra.mxu0 0.0
        %2272 = vmatpush.msra.mxu0 0.0
        %2273 = vmatpush.msra.mxu0 0.0
        %2274 = vmatpush.msra.mxu0 0.0
        %2275 = vmatpush.msra.mxu0 0.0
        %2276 = vmatpush.msra.mxu0 0.0
        %2277 = vmatpush.msra.mxu0 0.0
        %2278 = vmatpush.msra.mxu0 0.0
        %2279 = vmatpush.msra.mxu0 0.0
        %2280 = vmatpush.msra.mxu0 0.0
        %2281 = vmatpush.msra.mxu0 0.0
        %v2282 = vand.u32 %v199, 4294901760
        %2283 = vmatpush.msra.mxu0 %v2282
        %v2284 = vand.u32 %v198, 4294901760
        %2285 = vmatpush.msra.mxu0 %v2284
        %v2286 = vand.u32 %v2040, 4294901760
        %2287 = vmatmul.f32.gmra.mxu0 %v2286
        %v2288 = vpop.f32.mrf.mxu0
        %v2289 = vadd.f32 %v2254, %v2288
        %v2290 = vand.u32 %v2043, 4294901760
        %2291 = vmatmul.f32.gmra.mxu0 %v2290
        %v2292 = vpop.f32.mrf.mxu0
        %v2293 = vadd.f32 %v2258, %v2292
        %v2294 = vand.u32 %v2046, 4294901760
        %2295 = vmatmul.f32.gmra.mxu0 %v2294
        %v2296 = vpop.f32.mrf.mxu0
        %v2297 = vadd.f32 %v2262, %v2296
        %v2298 = vand.u32 %v2049, 4294901760
        %2299 = vmatmul.f32.gmra.mxu0 %v2298
        %v2300 = vpop.f32.mrf.mxu0
        %v2301 = vadd.f32 %v2266, %v2300
        %2302 = vdwg.mxu0
        %s2303 = scalar_lea.vmem %s191, 96 [#allocation5]
        %2304 = vst.msk [vmem:[%s2303] sm:$0xff] %vm731, %v2289
        %2305 = vst.msk [vmem:[%s2303 + $0x8] sm:$0xff] %vm731, %v2293
        %2306 = vst.msk [vmem:[%s2303 + $0x10] sm:$0xff] %vm731, %v2297
        %2307 = vst.msk [vmem:[%s2303 + $0x18] sm:$0xff] %vm731, %v2301
        %s2308 = sand.u32 %s96, 1
        %s2309 = scalar_lea.sflag [#allocation4], %s2308
        %s2310 = sand.u32 %s96, 1
        %s2311 = smul.addr %s2310, 128
        %s2312 = scalar_lea.vmem [#allocation5], %s2311
        // Predicated region
        $region37: #{tpu_custom_call.1} parent=31 // pred_check
          %p2313 = pneg %p106
        $region38: #{tpu_custom_call.1} parent=31 // pred_check_branch
          %2315 = sbr.rel (%p2313) target = $region40
        $region39: #{tpu_custom_call.1} parent=31 // pred_region
          %s2316 = smul.u32 4, %s20
          %2318 = vsyncadd %s2309, 0
          %s2319 = smul.addr %s2316, 4
          %s2320 = smul.addr %s2319, 8
          %s2321 = scalar_lea.hbm %s3, %s2320
          %s2322 = sshll.u32 %s2312, 4
          %s2323 = int_to_ptr.vmem [resolvable:$true] %s2322
          %s2324 = sshll.u32 %s2321, 4
          %s2325 = int_to_ptr.hbm [resolvable:$true] %s2324
          %2330 = dma.vmem_to_hbm [thread:$0]  %s2323, 2048, %s2325, %s2309, 128, 128, 8
        $region40: #{tpu_custom_call.1} parent=31 // pred_fallthru
          _
      $region32: #{tpu_custom_call.1} parent=5 // pred_fallthru
        _
      %p2331 = scmp.le.s32.totalorder 2, %s15
      // Predicated region
      $region41: #{tpu_custom_call.1} parent=5 // pred_check
        %p2332 = pneg %p2331
      $region42: #{tpu_custom_call.1} parent=5 // pred_check_branch
        %2334 = sbr.rel (%p2332) target = $region44
      $region43: #{tpu_custom_call.1} parent=5 // pred_region
        %s2335 = ssub.s32 %s15, 2
        // Predicated region
        $region45: #{tpu_custom_call.1} parent=43 // pred_check
          %p2336 = pneg %p112
        $region46: #{tpu_custom_call.1} parent=43 // pred_check_branch
          %2338 = sbr.rel (%p2336) target = $region48
        $region47: #{tpu_custom_call.1} parent=43 // pred_region
          %s2339 = sand.u32 %s97, 1
          %s2340 = scalar_lea.sflag [#allocation4], %s2339
          %s2341 = sand.u32 %s97, 1
          %s2342 = smul.addr %s2341, 128
          %s2343 = scalar_lea.vmem [#allocation5], %s2342
          %2345 = dma.done %s2340, 2048
        $region48: #{tpu_custom_call.1} parent=43 // pred_fallthru
          _
      $region44: #{tpu_custom_call.1} parent=5 // pred_fallthru
        _
    $region6: #{tpu_custom_call.1} parent=1 // loop_footer
      %s19 = sadd.s32 1, %s15
    $region7: #{tpu_custom_call.1} parent=1 // loop_footer_branch
      %14 = sbr.rel target = $region3
    $region8: #{tpu_custom_call.1} parent=1 // loop_exit
      _
    %2346 = vsyncpa [#allocation3], 1
    %s2347 = scalar_lea.sflag [#allocation3], 1
    %2348 = vsyncpa %s2347, 1
    %2349 = vsyncpa [#allocation4], 1
    %s2350 = scalar_lea.sflag [#allocation4], 1
    %2351 = vsyncpa %s2350, 1

</llo_original>
